<compile_context>
chip_gen: v5e
topology: v5e:2x2
jax: 0.10.0
libtpu: 0.0.40
codegen_flags: <defaults>
</compile_context>

<pallas_src>
import jax
import jax.numpy as jnp
from jax import lax
from jax.experimental import pallas as pl
from jax.experimental.pallas import tpu as pltpu


def make_bilstm_kernel(T, B, H, O_PAD):
    """Fused bidirectional LSTM + Linear + LogSoftmax kernel (static T, B, H)."""

    def kernel(
        x_ref,      # [T*B, 2*D_in] bf16: rows are [x_t | x_{T-1-t}] per time block
        wih_ref,    # [2*D_in, 8H]  bf16: input weights, gate-interleaved columns
        wrec_ref,   # [2H, 8H]      bf16: block-diagonal recurrent weights
        b_ref,      # [1, 8H]       f32 : fused biases (b_ih + b_hh), interleaved
        w2_ref,     # [2H, O_PAD]   bf16: Linear weights, columns O..O_PAD are zero
        b2_ref,     # [1, O_PAD]    f32 : Linear bias, padded lanes hold -1e30
        out_ref,    # [T*B, O_PAD]  f32 : log-softmax output (lane-dense store)
        xp_scr,     # [T*B, 8H]     f32 : precomputed gate pre-activations
        hid_scr,    # [T*B, 2H]     f32 : time-aligned [h_fwd | h_bwd]
    ):
        H2, H4, H6, H8 = 2 * H, 4 * H, 6 * H, 8 * H

        # ---- one batched input projection for all timesteps and both directions ----
        xp_scr[...] = (
            jnp.dot(x_ref[...], wih_ref[...], preferred_element_type=jnp.float32)
            + b_ref[...]
        )

        wrec = wrec_ref[...]                      # hoisted, register-resident (bf16)

        h = jnp.zeros((B, H2), jnp.float32)       # [h_fwd | h_bwd]
        c = jnp.zeros((B, H2), jnp.float32)

        # ---- fully unrolled time loop: step s advances the forward chain at time s
        # and the backward chain at time T-1-s with a SINGLE block-diagonal matmul ----
        for s in range(T):
            pre = xp_scr[s * B:(s + 1) * B, :]                       # [B, 8H]
            z = pre + jnp.dot(h.astype(jnp.bfloat16), wrec,
                              preferred_element_type=jnp.float32)    # [B, 8H]

            # sigmoid(x) = 0.5*tanh(0.5*x) + 0.5 ; i,f of both dirs share one vreg.
            sif = 0.5 * jnp.tanh(0.5 * z[:, 0:H4]) + 0.5             # [B, 4H]
            g = jnp.tanh(z[:, H4:H6])                                # [B, 2H]
            o = 0.5 * jnp.tanh(0.5 * z[:, H6:H8]) + 0.5              # [B, 2H]
            i_g = sif[:, 0:H2]
            f_g = sif[:, H2:H4]

            c = f_g * c + i_g * g
            h = o * jnp.tanh(c)

            # Time-aligned hidden stores (off the recurrent dependency chain):
            # forward hidden belongs to time s, backward hidden to time T-1-s.
            hid_scr[s * B:(s + 1) * B, 0:H] = h[:, 0:H]
            hid_scr[(T - 1 - s) * B:(T - s) * B, H:H2] = h[:, H:H2]

        # ---- single fused Linear + LogSoftmax, one lane-dense [T*B, 128] store ----
        z2 = (
            jnp.dot(hid_scr[...].astype(jnp.bfloat16), w2_ref[...],
                    preferred_element_type=jnp.float32)
            + b2_ref[...]
        )
        z_max = jnp.max(z2, axis=-1, keepdims=True)
        zs = z2 - z_max
        lse = jnp.log(jnp.sum(jnp.exp(zs), axis=-1, keepdims=True))
        out_ref[...] = zs - lse

    return kernel


def pack_params(p, O_PAD):
    """Build the fused / block-diagonal bf16 weight layouts consumed by the kernel."""
    D_in = p["wih_f"].shape[1]
    H = p["whh_f"].shape[1]
    O = p["b2"].shape[-1]

    wih = jnp.zeros((2 * D_in, 8 * H), jnp.float32)
    wrec = jnp.zeros((2 * H, 8 * H), jnp.float32)
    b = jnp.zeros((1, 8 * H), jnp.float32)
    # Gate order (i, f, g, o); columns interleaved fwd|bwd per gate.
    for k in range(4):
        cf = slice((2 * k) * H, (2 * k + 1) * H)
        cb = slice((2 * k + 1) * H, (2 * k + 2) * H)
        wih = wih.at[0:D_in, cf].set(p["wih_f"][k])
        wih = wih.at[D_in:2 * D_in, cb].set(p["wih_b"][k])
        wrec = wrec.at[0:H, cf].set(p["whh_f"][k])
        wrec = wrec.at[H:2 * H, cb].set(p["whh_b"][k])
        b = b.at[:, cf].set(p["b_f"][k])
        b = b.at[:, cb].set(p["b_b"][k])

    w2 = jnp.zeros((2 * H, O_PAD), jnp.float32)
    w2 = w2.at[0:H, 0:O].set(p["w2_f"])
    w2 = w2.at[H:2 * H, 0:O].set(p["w2_b"])
    b2 = jnp.full((1, O_PAD), -1e30, jnp.float32)   # padded logits -> exp underflows
    b2 = b2.at[:, 0:O].set(p["b2"])

    return {
        "wih": wih.astype(jnp.bfloat16),
        "wrec": wrec.astype(jnp.bfloat16),
        "b": b,
        "w2": w2.astype(jnp.bfloat16),
        "b2": b2,
    }


def run_bilstm_kernel(x_tm, packed, O):
    """x_tm: time-major input [T, B, D_in] -> log-softmax output [T, B, O]."""
    T, B, D_in = x_tm.shape
    H = packed["wrec"].shape[0] // 2
    O_PAD = packed["w2"].shape[1]

    # Rows of the flattened input are [x_t | x_{T-1-t}] so the backward direction's
    # pre-activations come out already time-reversed inside the kernel.
    x2 = jnp.concatenate([x_tm, x_tm[::-1]], axis=-1).reshape(T * B, 2 * D_in)
    x2 = x2.astype(jnp.bfloat16)

    vmem = pl.BlockSpec(memory_space=pltpu.MemorySpace.VMEM)
    out_flat = pl.pallas_call(
        make_bilstm_kernel(T, B, H, O_PAD),
        out_shape=jax.ShapeDtypeStruct((T * B, O_PAD), jnp.float32),
        in_specs=[vmem] * 6,
        out_specs=vmem,
        scratch_shapes=[
            pltpu.VMEM((T * B, 8 * H), jnp.float32),   # gate pre-activations
            pltpu.VMEM((T * B, 2 * H), jnp.float32),   # time-aligned hidden states
        ],
    )(x2, packed["wih"], packed["wrec"], packed["b"], packed["w2"], packed["b2"])
    return out_flat[:, :O].reshape(T, B, O)


def net_forward(x, y, length, packed, O):
    """Mirrors Net.forward: returns (y_sorted, out, length_sorted)."""
    max_len = int(jnp.max(length))
    x = x[:, :max_len, :]
    y = y[:, :max_len]

    # sort_batch: argsort of lengths, reversed (descending), as in the reference.
    inx = jnp.argsort(length)[::-1]
    x = x[inx]
    y = y[inx]
    length = length[inx]

    x_tm = jnp.transpose(x, (1, 0, 2))              # [T, B, D_in]
    out_tm = run_bilstm_kernel(x_tm, packed, O)     # [T, B, O]
    out = jnp.transpose(out_tm, (1, 0, 2))          # [B, T, O]
    return y, out, length


# ----------------------------- pure-JAX reference -----------------------------
def _lstm_dir_ref(x, wih, whh, b, reverse):
    B, T, _ = x.shape
    H = whh.shape[-1]

    def step(carry, xt):
        h, c = carry
        i = jax.nn.sigmoid(xt @ wih[0] + h @ whh[0] + b[0])
        f = jax.nn.sigmoid(xt @ wih[1] + h @ whh[1] + b[1])
        g = jnp.tanh(xt @ wih[2] + h @ whh[2] + b[2])
        o = jax.nn.sigmoid(xt @ wih[3] + h @ whh[3] + b[3])
        c = f * c + i * g
        h = o * jnp.tanh(c)
        return (h, c), h

    xs = jnp.transpose(x, (1, 0, 2))
    if reverse:
        xs = xs[::-1]
    _, hs = lax.scan(step, (jnp.zeros((B, H)), jnp.zeros((B, H))), xs)
    if reverse:
        hs = hs[::-1]
    return jnp.transpose(hs, (1, 0, 2))  # [B, T, H]


def _reference_forward(x_sorted, params):
    hf = _lstm_dir_ref(x_sorted, params["wih_f"], params["whh_f"], params["b_f"], False)
    hb = _lstm_dir_ref(x_sorted, params["wih_b"], params["whh_b"], params["b_b"], True)
    z = hf @ params["w2_f"] + hb @ params["w2_b"] + params["b2"]
    return jax.nn.log_softmax(z, axis=-1)


# ----------------------------------- main -------------------------------------
if __name__ == "__main__":
    # Net(input_dim=16, hidden_dim=32, output_dim=16, num_layers=1, biFlag=True)
    B, T, D_IN, H, O = 8, 8, 16, 32, 16
    O_PAD = 128   # lane-dense padded output width

    # Deterministic PyTorch-style uniform init; weights are rounded to bf16 so the
    # kernel's bf16 MXU operands and the f32 reference share identical stored values
    # (remaining divergence is only the per-step bf16 cast of h).
    wkey = jax.random.PRNGKey(42)
    ks = jax.random.split(wkey, 10)
    klstm = 1.0 / jnp.sqrt(H)
    klin = 1.0 / jnp.sqrt(2 * H)

    def u(k, shape, lim):
        w = jax.random.uniform(k, shape, jnp.float32, -lim, lim)
        return w.astype(jnp.bfloat16).astype(jnp.float32)

    params = {
        "wih_f": u(ks[0], (4, D_IN, H), klstm),
        "whh_f": u(ks[1], (4, H, H), klstm),
        "b_f":   u(ks[2], (4, 1, H), klstm) + u(ks[3], (4, 1, H), klstm),  # b_ih + b_hh
        "wih_b": u(ks[4], (4, D_IN, H), klstm),
        "whh_b": u(ks[5], (4, H, H), klstm),
        "b_b":   u(ks[6], (4, 1, H), klstm) + u(ks[7], (4, 1, H), klstm),
        "w2_f":  u(ks[8], (2 * H, O), klin)[:H],
        "w2_b":  u(ks[8], (2 * H, O), klin)[H:],
        "b2":    u(ks[9], (1, O), klin),
    }
    packed = pack_params(params, O_PAD)

    ikey = jax.random.PRNGKey(0)
    xk, yk = jax.random.split(ikey)
    x = jax.random.normal(xk, (B, T, D_IN), jnp.float32)
    x = x.astype(jnp.bfloat16).astype(jnp.float32)   # bf16-representable inputs
    y = jax.random.randint(yk, (B, T), 0, O, jnp.int32)
    length = jnp.full((B,), T, dtype=jnp.int32)      # all sequences full-length

    y_out, out, length_out = net_forward(x, y, length, packed, O)
    out = jax.block_until_ready(out)

    # Cross-check against a pure-JAX f32 reference of the same math.
    inx = jnp.argsort(length)[::-1]
    ref = _reference_forward(x[inx], params)
    assert out.shape == (B, T, O)
    max_err = float(jnp.max(jnp.abs(out - ref)))
    assert jnp.allclose(out, ref, atol=3e-2, rtol=3e-2), (
        f"mismatch vs. JAX reference (max abs err {max_err})"
    )

    print("KERNEL_OK")
</pallas_src>

<mosaic_0001>
module attributes {stable_mosaic.version = 11 : i64} {
  func.func @kernel(%arg0: memref<64x32xbf16, #tpu.memory_space<vmem>>, %arg1: memref<32x256xbf16, #tpu.memory_space<vmem>>, %arg2: memref<64x256xbf16, #tpu.memory_space<vmem>>, %arg3: memref<1x256xf32, #tpu.memory_space<vmem>>, %arg4: memref<64x128xbf16, #tpu.memory_space<vmem>>, %arg5: memref<1x128xf32, #tpu.memory_space<vmem>>, %arg6: memref<64x128xf32, #tpu.memory_space<vmem>>, %arg7: memref<64x256xf32, #tpu.memory_space<vmem>>, %arg8: memref<64x64xf32, #tpu.memory_space<vmem>>) attributes {dimension_semantics = [], scalar_prefetch = 0 : i64, scratch_operands = 2 : i64, tpu.core_type = #tpu.core_type<tc>} {
    %c0 = arith.constant 0 : index
    %c0_0 = arith.constant 0 : index
    %0 = vector.load %arg0[%c0, %c0_0] : memref<64x32xbf16, #tpu.memory_space<vmem>>, vector<64x32xbf16>
    %c0_1 = arith.constant 0 : index
    %c0_2 = arith.constant 0 : index
    %1 = vector.load %arg1[%c0_1, %c0_2] : memref<32x256xbf16, #tpu.memory_space<vmem>>, vector<32x256xbf16>
    %cst = arith.constant dense<0.000000e+00> : vector<64x256xf32>
    %2 = tpu.matmul %0, %1, %cst {dimension_numbers = #tpu.dot_dimension_numbers<[1], [0], [0], [1], [0, 0, 1, 1], [], []>} : vector<64x32xbf16>, vector<32x256xbf16>, vector<64x256xf32> -> vector<64x256xf32>
    %c0_3 = arith.constant 0 : index
    %c0_4 = arith.constant 0 : index
    %3 = vector.load %arg3[%c0_3, %c0_4] : memref<1x256xf32, #tpu.memory_space<vmem>>, vector<1x256xf32>
    %4 = vector.broadcast %3 : vector<1x256xf32> to vector<64x256xf32>
    %5 = arith.addf %2, %4 : vector<64x256xf32>
    %c0_5 = arith.constant 0 : index
    %c0_6 = arith.constant 0 : index
    %6 = vector.load %arg7[%c0_5, %c0_6] : memref<64x256xf32, #tpu.memory_space<vmem>>, vector<64x256xf32>
    tpu.vector_store %arg7[%c0_5, %c0_6], %5 {strides = array<i32>} : memref<64x256xf32, #tpu.memory_space<vmem>>, vector<64x256xf32>,
    %c0_7 = arith.constant 0 : index
    %c0_8 = arith.constant 0 : index
    %7 = vector.load %arg2[%c0_7, %c0_8] : memref<64x256xbf16, #tpu.memory_space<vmem>>, vector<64x256xbf16>
    %cst_9 = arith.constant 0.000000e+00 : f32
    %8 = vector.broadcast %cst_9 : f32 to vector<8x64xf32>
    %cst_10 = arith.constant 0.000000e+00 : f32
    %9 = vector.broadcast %cst_10 : f32 to vector<8x64xf32>
    %c0_11 = arith.constant 0 : index
    %c0_12 = arith.constant 0 : index
    %10 = vector.load %arg7[%c0_11, %c0_12] : memref<64x256xf32, #tpu.memory_space<vmem>>, vector<8x256xf32>
    %11 = arith.truncf %8 : vector<8x64xf32> to vector<8x64xbf16>
    %cst_13 = arith.constant dense<0.000000e+00> : vector<8x256xf32>
    %12 = tpu.matmul %11, %7, %cst_13 {dimension_numbers = #tpu.dot_dimension_numbers<[1], [0], [0], [1], [0, 0, 1, 1], [], []>} : vector<8x64xbf16>, vector<64x256xbf16>, vector<8x256xf32> -> vector<8x256xf32>
    %13 = arith.addf %10, %12 : vector<8x256xf32>
    %14 = vector.extract_strided_slice %13 {offsets = [0, 0], sizes = [8, 128], strides = [1, 1]} : vector<8x256xf32> to vector<8x128xf32>
    %cst_14 = arith.constant 5.000000e-01 : f32
    %15 = vector.broadcast %cst_14 : f32 to vector<8x128xf32>
    %16 = arith.mulf %15, %14 : vector<8x128xf32>
    %17 = math.tanh %16 : vector<8x128xf32>
    %cst_15 = arith.constant 5.000000e-01 : f32
    %18 = vector.broadcast %cst_15 : f32 to vector<8x128xf32>
    %19 = arith.mulf %18, %17 : vector<8x128xf32>
    %cst_16 = arith.constant 5.000000e-01 : f32
    %20 = vector.broadcast %cst_16 : f32 to vector<8x128xf32>
    %21 = arith.addf %19, %20 : vector<8x128xf32>
    %22 = vector.extract_strided_slice %13 {offsets = [0, 128], sizes = [8, 64], strides = [1, 1]} : vector<8x256xf32> to vector<8x64xf32>
    %23 = math.tanh %22 : vector<8x64xf32>
    %24 = vector.extract_strided_slice %13 {offsets = [0, 192], sizes = [8, 64], strides = [1, 1]} : vector<8x256xf32> to vector<8x64xf32>
    %cst_17 = arith.constant 5.000000e-01 : f32
    %25 = vector.broadcast %cst_17 : f32 to vector<8x64xf32>
    %26 = arith.mulf %25, %24 : vector<8x64xf32>
    %27 = math.tanh %26 : vector<8x64xf32>
    %cst_18 = arith.constant 5.000000e-01 : f32
    %28 = vector.broadcast %cst_18 : f32 to vector<8x64xf32>
    %29 = arith.mulf %28, %27 : vector<8x64xf32>
    %cst_19 = arith.constant 5.000000e-01 : f32
    %30 = vector.broadcast %cst_19 : f32 to vector<8x64xf32>
    %31 = arith.addf %29, %30 : vector<8x64xf32>
    %32 = vector.extract_strided_slice %21 {offsets = [0, 0], sizes = [8, 64], strides = [1, 1]} : vector<8x128xf32> to vector<8x64xf32>
    %33 = vector.extract_strided_slice %21 {offsets = [0, 64], sizes = [8, 64], strides = [1, 1]} : vector<8x128xf32> to vector<8x64xf32>
    %34 = arith.mulf %33, %9 : vector<8x64xf32>
    %35 = arith.mulf %32, %23 : vector<8x64xf32>
    %36 = arith.addf %34, %35 : vector<8x64xf32>
    %37 = math.tanh %36 : vector<8x64xf32>
    %38 = arith.mulf %31, %37 : vector<8x64xf32>
    %39 = vector.extract_strided_slice %38 {offsets = [0, 0], sizes = [8, 32], strides = [1, 1]} : vector<8x64xf32> to vector<8x32xf32>
    %c0_20 = arith.constant 0 : index
    %c0_21 = arith.constant 0 : index
    %40 = vector.load %arg8[%c0_20, %c0_21] : memref<64x64xf32, #tpu.memory_space<vmem>>, vector<8x32xf32>
    tpu.vector_store %arg8[%c0_20, %c0_21], %39 {strides = array<i32>} : memref<64x64xf32, #tpu.memory_space<vmem>>, vector<8x32xf32>,
    %41 = vector.extract_strided_slice %38 {offsets = [0, 32], sizes = [8, 32], strides = [1, 1]} : vector<8x64xf32> to vector<8x32xf32>
    %c56 = arith.constant 56 : index
    %c32 = arith.constant 32 : index
    %42 = vector.load %arg8[%c56, %c32] : memref<64x64xf32, #tpu.memory_space<vmem>>, vector<8x32xf32>
    tpu.vector_store %arg8[%c56, %c32], %41 {strides = array<i32>} : memref<64x64xf32, #tpu.memory_space<vmem>>, vector<8x32xf32>,
    %c8 = arith.constant 8 : index
    %c0_22 = arith.constant 0 : index
    %43 = vector.load %arg7[%c8, %c0_22] : memref<64x256xf32, #tpu.memory_space<vmem>>, vector<8x256xf32>
    %44 = arith.truncf %38 : vector<8x64xf32> to vector<8x64xbf16>
    %cst_23 = arith.constant dense<0.000000e+00> : vector<8x256xf32>
    %45 = tpu.matmul %44, %7, %cst_23 {dimension_numbers = #tpu.dot_dimension_numbers<[1], [0], [0], [1], [0, 0, 1, 1], [], []>} : vector<8x64xbf16>, vector<64x256xbf16>, vector<8x256xf32> -> vector<8x256xf32>
    %46 = arith.addf %43, %45 : vector<8x256xf32>
    %47 = vector.extract_strided_slice %46 {offsets = [0, 0], sizes = [8, 128], strides = [1, 1]} : vector<8x256xf32> to vector<8x128xf32>
    %cst_24 = arith.constant 5.000000e-01 : f32
    %48 = vector.broadcast %cst_24 : f32 to vector<8x128xf32>
    %49 = arith.mulf %48, %47 : vector<8x128xf32>
    %50 = math.tanh %49 : vector<8x128xf32>
    %cst_25 = arith.constant 5.000000e-01 : f32
    %51 = vector.broadcast %cst_25 : f32 to vector<8x128xf32>
    %52 = arith.mulf %51, %50 : vector<8x128xf32>
    %cst_26 = arith.constant 5.000000e-01 : f32
    %53 = vector.broadcast %cst_26 : f32 to vector<8x128xf32>
    %54 = arith.addf %52, %53 : vector<8x128xf32>
    %55 = vector.extract_strided_slice %46 {offsets = [0, 128], sizes = [8, 64], strides = [1, 1]} : vector<8x256xf32> to vector<8x64xf32>
    %56 = math.tanh %55 : vector<8x64xf32>
    %57 = vector.extract_strided_slice %46 {offsets = [0, 192], sizes = [8, 64], strides = [1, 1]} : vector<8x256xf32> to vector<8x64xf32>
    %cst_27 = arith.constant 5.000000e-01 : f32
    %58 = vector.broadcast %cst_27 : f32 to vector<8x64xf32>
    %59 = arith.mulf %58, %57 : vector<8x64xf32>
    %60 = math.tanh %59 : vector<8x64xf32>
    %cst_28 = arith.constant 5.000000e-01 : f32
    %61 = vector.broadcast %cst_28 : f32 to vector<8x64xf32>
    %62 = arith.mulf %61, %60 : vector<8x64xf32>
    %cst_29 = arith.constant 5.000000e-01 : f32
    %63 = vector.broadcast %cst_29 : f32 to vector<8x64xf32>
    %64 = arith.addf %62, %63 : vector<8x64xf32>
    %65 = vector.extract_strided_slice %54 {offsets = [0, 0], sizes = [8, 64], strides = [1, 1]} : vector<8x128xf32> to vector<8x64xf32>
    %66 = vector.extract_strided_slice %54 {offsets = [0, 64], sizes = [8, 64], strides = [1, 1]} : vector<8x128xf32> to vector<8x64xf32>
    %67 = arith.mulf %66, %36 : vector<8x64xf32>
    %68 = arith.mulf %65, %56 : vector<8x64xf32>
    %69 = arith.addf %67, %68 : vector<8x64xf32>
    %70 = math.tanh %69 : vector<8x64xf32>
    %71 = arith.mulf %64, %70 : vector<8x64xf32>
    %72 = vector.extract_strided_slice %71 {offsets = [0, 0], sizes = [8, 32], strides = [1, 1]} : vector<8x64xf32> to vector<8x32xf32>
    %c8_30 = arith.constant 8 : index
    %c0_31 = arith.constant 0 : index
    %73 = vector.load %arg8[%c8_30, %c0_31] : memref<64x64xf32, #tpu.memory_space<vmem>>, vector<8x32xf32>
    tpu.vector_store %arg8[%c8_30, %c0_31], %72 {strides = array<i32>} : memref<64x64xf32, #tpu.memory_space<vmem>>, vector<8x32xf32>,
    %74 = vector.extract_strided_slice %71 {offsets = [0, 32], sizes = [8, 32], strides = [1, 1]} : vector<8x64xf32> to vector<8x32xf32>
    %c48 = arith.constant 48 : index
    %c32_32 = arith.constant 32 : index
    %75 = vector.load %arg8[%c48, %c32_32] : memref<64x64xf32, #tpu.memory_space<vmem>>, vector<8x32xf32>
    tpu.vector_store %arg8[%c48, %c32_32], %74 {strides = array<i32>} : memref<64x64xf32, #tpu.memory_space<vmem>>, vector<8x32xf32>,
    %c16 = arith.constant 16 : index
    %c0_33 = arith.constant 0 : index
    %76 = vector.load %arg7[%c16, %c0_33] : memref<64x256xf32, #tpu.memory_space<vmem>>, vector<8x256xf32>
    %77 = arith.truncf %71 : vector<8x64xf32> to vector<8x64xbf16>
    %cst_34 = arith.constant dense<0.000000e+00> : vector<8x256xf32>
    %78 = tpu.matmul %77, %7, %cst_34 {dimension_numbers = #tpu.dot_dimension_numbers<[1], [0], [0], [1], [0, 0, 1, 1], [], []>} : vector<8x64xbf16>, vector<64x256xbf16>, vector<8x256xf32> -> vector<8x256xf32>
    %79 = arith.addf %76, %78 : vector<8x256xf32>
    %80 = vector.extract_strided_slice %79 {offsets = [0, 0], sizes = [8, 128], strides = [1, 1]} : vector<8x256xf32> to vector<8x128xf32>
    %cst_35 = arith.constant 5.000000e-01 : f32
    %81 = vector.broadcast %cst_35 : f32 to vector<8x128xf32>
    %82 = arith.mulf %81, %80 : vector<8x128xf32>
    %83 = math.tanh %82 : vector<8x128xf32>
    %cst_36 = arith.constant 5.000000e-01 : f32
    %84 = vector.broadcast %cst_36 : f32 to vector<8x128xf32>
    %85 = arith.mulf %84, %83 : vector<8x128xf32>
    %cst_37 = arith.constant 5.000000e-01 : f32
    %86 = vector.broadcast %cst_37 : f32 to vector<8x128xf32>
    %87 = arith.addf %85, %86 : vector<8x128xf32>
    %88 = vector.extract_strided_slice %79 {offsets = [0, 128], sizes = [8, 64], strides = [1, 1]} : vector<8x256xf32> to vector<8x64xf32>
    %89 = math.tanh %88 : vector<8x64xf32>
    %90 = vector.extract_strided_slice %79 {offsets = [0, 192], sizes = [8, 64], strides = [1, 1]} : vector<8x256xf32> to vector<8x64xf32>
    %cst_38 = arith.constant 5.000000e-01 : f32
    %91 = vector.broadcast %cst_38 : f32 to vector<8x64xf32>
    %92 = arith.mulf %91, %90 : vector<8x64xf32>
    %93 = math.tanh %92 : vector<8x64xf32>
    %cst_39 = arith.constant 5.000000e-01 : f32
    %94 = vector.broadcast %cst_39 : f32 to vector<8x64xf32>
    %95 = arith.mulf %94, %93 : vector<8x64xf32>
    %cst_40 = arith.constant 5.000000e-01 : f32
    %96 = vector.broadcast %cst_40 : f32 to vector<8x64xf32>
    %97 = arith.addf %95, %96 : vector<8x64xf32>
    %98 = vector.extract_strided_slice %87 {offsets = [0, 0], sizes = [8, 64], strides = [1, 1]} : vector<8x128xf32> to vector<8x64xf32>
    %99 = vector.extract_strided_slice %87 {offsets = [0, 64], sizes = [8, 64], strides = [1, 1]} : vector<8x128xf32> to vector<8x64xf32>
    %100 = arith.mulf %99, %69 : vector<8x64xf32>
    %101 = arith.mulf %98, %89 : vector<8x64xf32>
    %102 = arith.addf %100, %101 : vector<8x64xf32>
    %103 = math.tanh %102 : vector<8x64xf32>
    %104 = arith.mulf %97, %103 : vector<8x64xf32>
    %105 = vector.extract_strided_slice %104 {offsets = [0, 0], sizes = [8, 32], strides = [1, 1]} : vector<8x64xf32> to vector<8x32xf32>
    %c16_41 = arith.constant 16 : index
    %c0_42 = arith.constant 0 : index
    %106 = vector.load %arg8[%c16_41, %c0_42] : memref<64x64xf32, #tpu.memory_space<vmem>>, vector<8x32xf32>
    tpu.vector_store %arg8[%c16_41, %c0_42], %105 {strides = array<i32>} : memref<64x64xf32, #tpu.memory_space<vmem>>, vector<8x32xf32>,
    %107 = vector.extract_strided_slice %104 {offsets = [0, 32], sizes = [8, 32], strides = [1, 1]} : vector<8x64xf32> to vector<8x32xf32>
    %c40 = arith.constant 40 : index
    %c32_43 = arith.constant 32 : index
    %108 = vector.load %arg8[%c40, %c32_43] : memref<64x64xf32, #tpu.memory_space<vmem>>, vector<8x32xf32>
    tpu.vector_store %arg8[%c40, %c32_43], %107 {strides = array<i32>} : memref<64x64xf32, #tpu.memory_space<vmem>>, vector<8x32xf32>,
    %c24 = arith.constant 24 : index
    %c0_44 = arith.constant 0 : index
    %109 = vector.load %arg7[%c24, %c0_44] : memref<64x256xf32, #tpu.memory_space<vmem>>, vector<8x256xf32>
    %110 = arith.truncf %104 : vector<8x64xf32> to vector<8x64xbf16>
    %cst_45 = arith.constant dense<0.000000e+00> : vector<8x256xf32>
    %111 = tpu.matmul %110, %7, %cst_45 {dimension_numbers = #tpu.dot_dimension_numbers<[1], [0], [0], [1], [0, 0, 1, 1], [], []>} : vector<8x64xbf16>, vector<64x256xbf16>, vector<8x256xf32> -> vector<8x256xf32>
    %112 = arith.addf %109, %111 : vector<8x256xf32>
    %113 = vector.extract_strided_slice %112 {offsets = [0, 0], sizes = [8, 128], strides = [1, 1]} : vector<8x256xf32> to vector<8x128xf32>
    %cst_46 = arith.constant 5.000000e-01 : f32
    %114 = vector.broadcast %cst_46 : f32 to vector<8x128xf32>
    %115 = arith.mulf %114, %113 : vector<8x128xf32>
    %116 = math.tanh %115 : vector<8x128xf32>
    %cst_47 = arith.constant 5.000000e-01 : f32
    %117 = vector.broadcast %cst_47 : f32 to vector<8x128xf32>
    %118 = arith.mulf %117, %116 : vector<8x128xf32>
    %cst_48 = arith.constant 5.000000e-01 : f32
    %119 = vector.broadcast %cst_48 : f32 to vector<8x128xf32>
    %120 = arith.addf %118, %119 : vector<8x128xf32>
    %121 = vector.extract_strided_slice %112 {offsets = [0, 128], sizes = [8, 64], strides = [1, 1]} : vector<8x256xf32> to vector<8x64xf32>
    %122 = math.tanh %121 : vector<8x64xf32>
    %123 = vector.extract_strided_slice %112 {offsets = [0, 192], sizes = [8, 64], strides = [1, 1]} : vector<8x256xf32> to vector<8x64xf32>
    %cst_49 = arith.constant 5.000000e-01 : f32
    %124 = vector.broadcast %cst_49 : f32 to vector<8x64xf32>
    %125 = arith.mulf %124, %123 : vector<8x64xf32>
    %126 = math.tanh %125 : vector<8x64xf32>
    %cst_50 = arith.constant 5.000000e-01 : f32
    %127 = vector.broadcast %cst_50 : f32 to vector<8x64xf32>
    %128 = arith.mulf %127, %126 : vector<8x64xf32>
    %cst_51 = arith.constant 5.000000e-01 : f32
    %129 = vector.broadcast %cst_51 : f32 to vector<8x64xf32>
    %130 = arith.addf %128, %129 : vector<8x64xf32>
    %131 = vector.extract_strided_slice %120 {offsets = [0, 0], sizes = [8, 64], strides = [1, 1]} : vector<8x128xf32> to vector<8x64xf32>
    %132 = vector.extract_strided_slice %120 {offsets = [0, 64], sizes = [8, 64], strides = [1, 1]} : vector<8x128xf32> to vector<8x64xf32>
    %133 = arith.mulf %132, %102 : vector<8x64xf32>
    %134 = arith.mulf %131, %122 : vector<8x64xf32>
    %135 = arith.addf %133, %134 : vector<8x64xf32>
    %136 = math.tanh %135 : vector<8x64xf32>
    %137 = arith.mulf %130, %136 : vector<8x64xf32>
    %138 = vector.extract_strided_slice %137 {offsets = [0, 0], sizes = [8, 32], strides = [1, 1]} : vector<8x64xf32> to vector<8x32xf32>
    %c24_52 = arith.constant 24 : index
    %c0_53 = arith.constant 0 : index
    %139 = vector.load %arg8[%c24_52, %c0_53] : memref<64x64xf32, #tpu.memory_space<vmem>>, vector<8x32xf32>
    tpu.vector_store %arg8[%c24_52, %c0_53], %138 {strides = array<i32>} : memref<64x64xf32, #tpu.memory_space<vmem>>, vector<8x32xf32>,
    %140 = vector.extract_strided_slice %137 {offsets = [0, 32], sizes = [8, 32], strides = [1, 1]} : vector<8x64xf32> to vector<8x32xf32>
    %c32_54 = arith.constant 32 : index
    %c32_55 = arith.constant 32 : index
    %141 = vector.load %arg8[%c32_54, %c32_55] : memref<64x64xf32, #tpu.memory_space<vmem>>, vector<8x32xf32>
    tpu.vector_store %arg8[%c32_54, %c32_55], %140 {strides = array<i32>} : memref<64x64xf32, #tpu.memory_space<vmem>>, vector<8x32xf32>,
    %c32_56 = arith.constant 32 : index
    %c0_57 = arith.constant 0 : index
    %142 = vector.load %arg7[%c32_56, %c0_57] : memref<64x256xf32, #tpu.memory_space<vmem>>, vector<8x256xf32>
    %143 = arith.truncf %137 : vector<8x64xf32> to vector<8x64xbf16>
    %cst_58 = arith.constant dense<0.000000e+00> : vector<8x256xf32>
    %144 = tpu.matmul %143, %7, %cst_58 {dimension_numbers = #tpu.dot_dimension_numbers<[1], [0], [0], [1], [0, 0, 1, 1], [], []>} : vector<8x64xbf16>, vector<64x256xbf16>, vector<8x256xf32> -> vector<8x256xf32>
    %145 = arith.addf %142, %144 : vector<8x256xf32>
    %146 = vector.extract_strided_slice %145 {offsets = [0, 0], sizes = [8, 128], strides = [1, 1]} : vector<8x256xf32> to vector<8x128xf32>
    %cst_59 = arith.constant 5.000000e-01 : f32
    %147 = vector.broadcast %cst_59 : f32 to vector<8x128xf32>
    %148 = arith.mulf %147, %146 : vector<8x128xf32>
    %149 = math.tanh %148 : vector<8x128xf32>
    %cst_60 = arith.constant 5.000000e-01 : f32
    %150 = vector.broadcast %cst_60 : f32 to vector<8x128xf32>
    %151 = arith.mulf %150, %149 : vector<8x128xf32>
    %cst_61 = arith.constant 5.000000e-01 : f32
    %152 = vector.broadcast %cst_61 : f32 to vector<8x128xf32>
    %153 = arith.addf %151, %152 : vector<8x128xf32>
    %154 = vector.extract_strided_slice %145 {offsets = [0, 128], sizes = [8, 64], strides = [1, 1]} : vector<8x256xf32> to vector<8x64xf32>
    %155 = math.tanh %154 : vector<8x64xf32>
    %156 = vector.extract_strided_slice %145 {offsets = [0, 192], sizes = [8, 64], strides = [1, 1]} : vector<8x256xf32> to vector<8x64xf32>
    %cst_62 = arith.constant 5.000000e-01 : f32
    %157 = vector.broadcast %cst_62 : f32 to vector<8x64xf32>
    %158 = arith.mulf %157, %156 : vector<8x64xf32>
    %159 = math.tanh %158 : vector<8x64xf32>
    %cst_63 = arith.constant 5.000000e-01 : f32
    %160 = vector.broadcast %cst_63 : f32 to vector<8x64xf32>
    %161 = arith.mulf %160, %159 : vector<8x64xf32>
    %cst_64 = arith.constant 5.000000e-01 : f32
    %162 = vector.broadcast %cst_64 : f32 to vector<8x64xf32>
    %163 = arith.addf %161, %162 : vector<8x64xf32>
    %164 = vector.extract_strided_slice %153 {offsets = [0, 0], sizes = [8, 64], strides = [1, 1]} : vector<8x128xf32> to vector<8x64xf32>
    %165 = vector.extract_strided_slice %153 {offsets = [0, 64], sizes = [8, 64], strides = [1, 1]} : vector<8x128xf32> to vector<8x64xf32>
    %166 = arith.mulf %165, %135 : vector<8x64xf32>
    %167 = arith.mulf %164, %155 : vector<8x64xf32>
    %168 = arith.addf %166, %167 : vector<8x64xf32>
    %169 = math.tanh %168 : vector<8x64xf32>
    %170 = arith.mulf %163, %169 : vector<8x64xf32>
    %171 = vector.extract_strided_slice %170 {offsets = [0, 0], sizes = [8, 32], strides = [1, 1]} : vector<8x64xf32> to vector<8x32xf32>
    %c32_65 = arith.constant 32 : index
    %c0_66 = arith.constant 0 : index
    %172 = vector.load %arg8[%c32_65, %c0_66] : memref<64x64xf32, #tpu.memory_space<vmem>>, vector<8x32xf32>
    tpu.vector_store %arg8[%c32_65, %c0_66], %171 {strides = array<i32>} : memref<64x64xf32, #tpu.memory_space<vmem>>, vector<8x32xf32>,
    %173 = vector.extract_strided_slice %170 {offsets = [0, 32], sizes = [8, 32], strides = [1, 1]} : vector<8x64xf32> to vector<8x32xf32>
    %c24_67 = arith.constant 24 : index
    %c32_68 = arith.constant 32 : index
    %174 = vector.load %arg8[%c24_67, %c32_68] : memref<64x64xf32, #tpu.memory_space<vmem>>, vector<8x32xf32>
    tpu.vector_store %arg8[%c24_67, %c32_68], %173 {strides = array<i32>} : memref<64x64xf32, #tpu.memory_space<vmem>>, vector<8x32xf32>,
    %c40_69 = arith.constant 40 : index
    %c0_70 = arith.constant 0 : index
    %175 = vector.load %arg7[%c40_69, %c0_70] : memref<64x256xf32, #tpu.memory_space<vmem>>, vector<8x256xf32>
    %176 = arith.truncf %170 : vector<8x64xf32> to vector<8x64xbf16>
    %cst_71 = arith.constant dense<0.000000e+00> : vector<8x256xf32>
    %177 = tpu.matmul %176, %7, %cst_71 {dimension_numbers = #tpu.dot_dimension_numbers<[1], [0], [0], [1], [0, 0, 1, 1], [], []>} : vector<8x64xbf16>, vector<64x256xbf16>, vector<8x256xf32> -> vector<8x256xf32>
    %178 = arith.addf %175, %177 : vector<8x256xf32>
    %179 = vector.extract_strided_slice %178 {offsets = [0, 0], sizes = [8, 128], strides = [1, 1]} : vector<8x256xf32> to vector<8x128xf32>
    %cst_72 = arith.constant 5.000000e-01 : f32
    %180 = vector.broadcast %cst_72 : f32 to vector<8x128xf32>
    %181 = arith.mulf %180, %179 : vector<8x128xf32>
    %182 = math.tanh %181 : vector<8x128xf32>
    %cst_73 = arith.constant 5.000000e-01 : f32
    %183 = vector.broadcast %cst_73 : f32 to vector<8x128xf32>
    %184 = arith.mulf %183, %182 : vector<8x128xf32>
    %cst_74 = arith.constant 5.000000e-01 : f32
    %185 = vector.broadcast %cst_74 : f32 to vector<8x128xf32>
    %186 = arith.addf %184, %185 : vector<8x128xf32>
    %187 = vector.extract_strided_slice %178 {offsets = [0, 128], sizes = [8, 64], strides = [1, 1]} : vector<8x256xf32> to vector<8x64xf32>
    %188 = math.tanh %187 : vector<8x64xf32>
    %189 = vector.extract_strided_slice %178 {offsets = [0, 192], sizes = [8, 64], strides = [1, 1]} : vector<8x256xf32> to vector<8x64xf32>
    %cst_75 = arith.constant 5.000000e-01 : f32
    %190 = vector.broadcast %cst_75 : f32 to vector<8x64xf32>
    %191 = arith.mulf %190, %189 : vector<8x64xf32>
    %192 = math.tanh %191 : vector<8x64xf32>
    %cst_76 = arith.constant 5.000000e-01 : f32
    %193 = vector.broadcast %cst_76 : f32 to vector<8x64xf32>
    %194 = arith.mulf %193, %192 : vector<8x64xf32>
    %cst_77 = arith.constant 5.000000e-01 : f32
    %195 = vector.broadcast %cst_77 : f32 to vector<8x64xf32>
    %196 = arith.addf %194, %195 : vector<8x64xf32>
    %197 = vector.extract_strided_slice %186 {offsets = [0, 0], sizes = [8, 64], strides = [1, 1]} : vector<8x128xf32> to vector<8x64xf32>
    %198 = vector.extract_strided_slice %186 {offsets = [0, 64], sizes = [8, 64], strides = [1, 1]} : vector<8x128xf32> to vector<8x64xf32>
    %199 = arith.mulf %198, %168 : vector<8x64xf32>
    %200 = arith.mulf %197, %188 : vector<8x64xf32>
    %201 = arith.addf %199, %200 : vector<8x64xf32>
    %202 = math.tanh %201 : vector<8x64xf32>
    %203 = arith.mulf %196, %202 : vector<8x64xf32>
    %204 = vector.extract_strided_slice %203 {offsets = [0, 0], sizes = [8, 32], strides = [1, 1]} : vector<8x64xf32> to vector<8x32xf32>
    %c40_78 = arith.constant 40 : index
    %c0_79 = arith.constant 0 : index
    %205 = vector.load %arg8[%c40_78, %c0_79] : memref<64x64xf32, #tpu.memory_space<vmem>>, vector<8x32xf32>
    tpu.vector_store %arg8[%c40_78, %c0_79], %204 {strides = array<i32>} : memref<64x64xf32, #tpu.memory_space<vmem>>, vector<8x32xf32>,
    %206 = vector.extract_strided_slice %203 {offsets = [0, 32], sizes = [8, 32], strides = [1, 1]} : vector<8x64xf32> to vector<8x32xf32>
    %c16_80 = arith.constant 16 : index
    %c32_81 = arith.constant 32 : index
    %207 = vector.load %arg8[%c16_80, %c32_81] : memref<64x64xf32, #tpu.memory_space<vmem>>, vector<8x32xf32>
    tpu.vector_store %arg8[%c16_80, %c32_81], %206 {strides = array<i32>} : memref<64x64xf32, #tpu.memory_space<vmem>>, vector<8x32xf32>,
    %c48_82 = arith.constant 48 : index
    %c0_83 = arith.constant 0 : index
    %208 = vector.load %arg7[%c48_82, %c0_83] : memref<64x256xf32, #tpu.memory_space<vmem>>, vector<8x256xf32>
    %209 = arith.truncf %203 : vector<8x64xf32> to vector<8x64xbf16>
    %cst_84 = arith.constant dense<0.000000e+00> : vector<8x256xf32>
    %210 = tpu.matmul %209, %7, %cst_84 {dimension_numbers = #tpu.dot_dimension_numbers<[1], [0], [0], [1], [0, 0, 1, 1], [], []>} : vector<8x64xbf16>, vector<64x256xbf16>, vector<8x256xf32> -> vector<8x256xf32>
    %211 = arith.addf %208, %210 : vector<8x256xf32>
    %212 = vector.extract_strided_slice %211 {offsets = [0, 0], sizes = [8, 128], strides = [1, 1]} : vector<8x256xf32> to vector<8x128xf32>
    %cst_85 = arith.constant 5.000000e-01 : f32
    %213 = vector.broadcast %cst_85 : f32 to vector<8x128xf32>
    %214 = arith.mulf %213, %212 : vector<8x128xf32>
    %215 = math.tanh %214 : vector<8x128xf32>
    %cst_86 = arith.constant 5.000000e-01 : f32
    %216 = vector.broadcast %cst_86 : f32 to vector<8x128xf32>
    %217 = arith.mulf %216, %215 : vector<8x128xf32>
    %cst_87 = arith.constant 5.000000e-01 : f32
    %218 = vector.broadcast %cst_87 : f32 to vector<8x128xf32>
    %219 = arith.addf %217, %218 : vector<8x128xf32>
    %220 = vector.extract_strided_slice %211 {offsets = [0, 128], sizes = [8, 64], strides = [1, 1]} : vector<8x256xf32> to vector<8x64xf32>
    %221 = math.tanh %220 : vector<8x64xf32>
    %222 = vector.extract_strided_slice %211 {offsets = [0, 192], sizes = [8, 64], strides = [1, 1]} : vector<8x256xf32> to vector<8x64xf32>
    %cst_88 = arith.constant 5.000000e-01 : f32
    %223 = vector.broadcast %cst_88 : f32 to vector<8x64xf32>
    %224 = arith.mulf %223, %222 : vector<8x64xf32>
    %225 = math.tanh %224 : vector<8x64xf32>
    %cst_89 = arith.constant 5.000000e-01 : f32
    %226 = vector.broadcast %cst_89 : f32 to vector<8x64xf32>
    %227 = arith.mulf %226, %225 : vector<8x64xf32>
    %cst_90 = arith.constant 5.000000e-01 : f32
    %228 = vector.broadcast %cst_90 : f32 to vector<8x64xf32>
    %229 = arith.addf %227, %228 : vector<8x64xf32>
    %230 = vector.extract_strided_slice %219 {offsets = [0, 0], sizes = [8, 64], strides = [1, 1]} : vector<8x128xf32> to vector<8x64xf32>
    %231 = vector.extract_strided_slice %219 {offsets = [0, 64], sizes = [8, 64], strides = [1, 1]} : vector<8x128xf32> to vector<8x64xf32>
    %232 = arith.mulf %231, %201 : vector<8x64xf32>
    %233 = arith.mulf %230, %221 : vector<8x64xf32>
    %234 = arith.addf %232, %233 : vector<8x64xf32>
    %235 = math.tanh %234 : vector<8x64xf32>
    %236 = arith.mulf %229, %235 : vector<8x64xf32>
    %237 = vector.extract_strided_slice %236 {offsets = [0, 0], sizes = [8, 32], strides = [1, 1]} : vector<8x64xf32> to vector<8x32xf32>
    %c48_91 = arith.constant 48 : index
    %c0_92 = arith.constant 0 : index
    %238 = vector.load %arg8[%c48_91, %c0_92] : memref<64x64xf32, #tpu.memory_space<vmem>>, vector<8x32xf32>
    tpu.vector_store %arg8[%c48_91, %c0_92], %237 {strides = array<i32>} : memref<64x64xf32, #tpu.memory_space<vmem>>, vector<8x32xf32>,
    %239 = vector.extract_strided_slice %236 {offsets = [0, 32], sizes = [8, 32], strides = [1, 1]} : vector<8x64xf32> to vector<8x32xf32>
    %c8_93 = arith.constant 8 : index
    %c32_94 = arith.constant 32 : index
    %240 = vector.load %arg8[%c8_93, %c32_94] : memref<64x64xf32, #tpu.memory_space<vmem>>, vector<8x32xf32>
    tpu.vector_store %arg8[%c8_93, %c32_94], %239 {strides = array<i32>} : memref<64x64xf32, #tpu.memory_space<vmem>>, vector<8x32xf32>,
    %c56_95 = arith.constant 56 : index
    %c0_96 = arith.constant 0 : index
    %241 = vector.load %arg7[%c56_95, %c0_96] : memref<64x256xf32, #tpu.memory_space<vmem>>, vector<8x256xf32>
    %242 = arith.truncf %236 : vector<8x64xf32> to vector<8x64xbf16>
    %cst_97 = arith.constant dense<0.000000e+00> : vector<8x256xf32>
    %243 = tpu.matmul %242, %7, %cst_97 {dimension_numbers = #tpu.dot_dimension_numbers<[1], [0], [0], [1], [0, 0, 1, 1], [], []>} : vector<8x64xbf16>, vector<64x256xbf16>, vector<8x256xf32> -> vector<8x256xf32>
    %244 = arith.addf %241, %243 : vector<8x256xf32>
    %245 = vector.extract_strided_slice %244 {offsets = [0, 0], sizes = [8, 128], strides = [1, 1]} : vector<8x256xf32> to vector<8x128xf32>
    %cst_98 = arith.constant 5.000000e-01 : f32
    %246 = vector.broadcast %cst_98 : f32 to vector<8x128xf32>
    %247 = arith.mulf %246, %245 : vector<8x128xf32>
    %248 = math.tanh %247 : vector<8x128xf32>
    %cst_99 = arith.constant 5.000000e-01 : f32
    %249 = vector.broadcast %cst_99 : f32 to vector<8x128xf32>
    %250 = arith.mulf %249, %248 : vector<8x128xf32>
    %cst_100 = arith.constant 5.000000e-01 : f32
    %251 = vector.broadcast %cst_100 : f32 to vector<8x128xf32>
    %252 = arith.addf %250, %251 : vector<8x128xf32>
    %253 = vector.extract_strided_slice %244 {offsets = [0, 128], sizes = [8, 64], strides = [1, 1]} : vector<8x256xf32> to vector<8x64xf32>
    %254 = math.tanh %253 : vector<8x64xf32>
    %255 = vector.extract_strided_slice %244 {offsets = [0, 192], sizes = [8, 64], strides = [1, 1]} : vector<8x256xf32> to vector<8x64xf32>
    %cst_101 = arith.constant 5.000000e-01 : f32
    %256 = vector.broadcast %cst_101 : f32 to vector<8x64xf32>
    %257 = arith.mulf %256, %255 : vector<8x64xf32>
    %258 = math.tanh %257 : vector<8x64xf32>
    %cst_102 = arith.constant 5.000000e-01 : f32
    %259 = vector.broadcast %cst_102 : f32 to vector<8x64xf32>
    %260 = arith.mulf %259, %258 : vector<8x64xf32>
    %cst_103 = arith.constant 5.000000e-01 : f32
    %261 = vector.broadcast %cst_103 : f32 to vector<8x64xf32>
    %262 = arith.addf %260, %261 : vector<8x64xf32>
    %263 = vector.extract_strided_slice %252 {offsets = [0, 0], sizes = [8, 64], strides = [1, 1]} : vector<8x128xf32> to vector<8x64xf32>
    %264 = vector.extract_strided_slice %252 {offsets = [0, 64], sizes = [8, 64], strides = [1, 1]} : vector<8x128xf32> to vector<8x64xf32>
    %265 = arith.mulf %264, %234 : vector<8x64xf32>
    %266 = arith.mulf %263, %254 : vector<8x64xf32>
    %267 = arith.addf %265, %266 : vector<8x64xf32>
    %268 = math.tanh %267 : vector<8x64xf32>
    %269 = arith.mulf %262, %268 : vector<8x64xf32>
    %270 = vector.extract_strided_slice %269 {offsets = [0, 0], sizes = [8, 32], strides = [1, 1]} : vector<8x64xf32> to vector<8x32xf32>
    %c56_104 = arith.constant 56 : index
    %c0_105 = arith.constant 0 : index
    %271 = vector.load %arg8[%c56_104, %c0_105] : memref<64x64xf32, #tpu.memory_space<vmem>>, vector<8x32xf32>
    tpu.vector_store %arg8[%c56_104, %c0_105], %270 {strides = array<i32>} : memref<64x64xf32, #tpu.memory_space<vmem>>, vector<8x32xf32>,
    %272 = vector.extract_strided_slice %269 {offsets = [0, 32], sizes = [8, 32], strides = [1, 1]} : vector<8x64xf32> to vector<8x32xf32>
    %c0_106 = arith.constant 0 : index
    %c32_107 = arith.constant 32 : index
    %273 = vector.load %arg8[%c0_106, %c32_107] : memref<64x64xf32, #tpu.memory_space<vmem>>, vector<8x32xf32>
    tpu.vector_store %arg8[%c0_106, %c32_107], %272 {strides = array<i32>} : memref<64x64xf32, #tpu.memory_space<vmem>>, vector<8x32xf32>,
    %c0_108 = arith.constant 0 : index
    %c0_109 = arith.constant 0 : index
    %274 = vector.load %arg8[%c0_108, %c0_109] : memref<64x64xf32, #tpu.memory_space<vmem>>, vector<64x64xf32>
    %275 = arith.truncf %274 : vector<64x64xf32> to vector<64x64xbf16>
    %c0_110 = arith.constant 0 : index
    %c0_111 = arith.constant 0 : index
    %276 = vector.load %arg4[%c0_110, %c0_111] : memref<64x128xbf16, #tpu.memory_space<vmem>>, vector<64x128xbf16>
    %cst_112 = arith.constant dense<0.000000e+00> : vector<64x128xf32>
    %277 = tpu.matmul %275, %276, %cst_112 {dimension_numbers = #tpu.dot_dimension_numbers<[1], [0], [0], [1], [0, 0, 1, 1], [], []>} : vector<64x64xbf16>, vector<64x128xbf16>, vector<64x128xf32> -> vector<64x128xf32>
    %c0_113 = arith.constant 0 : index
    %c0_114 = arith.constant 0 : index
    %278 = vector.load %arg5[%c0_113, %c0_114] : memref<1x128xf32, #tpu.memory_space<vmem>>, vector<1x128xf32>
    %279 = vector.broadcast %278 : vector<1x128xf32> to vector<64x128xf32>
    %280 = arith.addf %277, %279 : vector<64x128xf32>
    %cst_115 = arith.constant dense<0xFF800000> : vector<64xf32>
    %281 = vector.multi_reduction <maximumf>, %280, %cst_115 [1] : vector<64x128xf32> to vector<64xf32>
    %282 = vector.shape_cast %281 : vector<64xf32> to vector<64x1xf32>
    %283 = vector.broadcast %282 : vector<64x1xf32> to vector<64x128xf32>
    %284 = arith.subf %280, %283 : vector<64x128xf32>
    %285 = math.exp %284 : vector<64x128xf32>
    %cst_116 = arith.constant dense<0.000000e+00> : vector<64xf32>
    %286 = vector.multi_reduction <add>, %285, %cst_116 [1] : vector<64x128xf32> to vector<64xf32>
    %287 = vector.shape_cast %286 : vector<64xf32> to vector<64x1xf32>
    %288 = math.log %287 : vector<64x1xf32>
    %289 = vector.broadcast %288 : vector<64x1xf32> to vector<64x128xf32>
    %290 = arith.subf %284, %289 : vector<64x128xf32>
    %c0_117 = arith.constant 0 : index
    %c0_118 = arith.constant 0 : index
    %291 = vector.load %arg6[%c0_117, %c0_118] : memref<64x128xf32, #tpu.memory_space<vmem>>, vector<64x128xf32>
    tpu.vector_store %arg6[%c0_117, %c0_118], %290 {strides = array<i32>} : memref<64x128xf32, #tpu.memory_space<vmem>>, vector<64x128xf32>,
    return
  }
}

</mosaic_0001>

<llo_original>
// kernel: tpu_custom_call.1
$region0: #{tpu_custom_call.1}
  #allocation0 [shape = 'u32[]', space=smem, size = 0x4, offset = 0x4, fixed_abs, tag = 'smem constant byte address 0x4 - core index']
  #allocation1 [shape = 'u32[72,128]{1,0:T(1,128)}', space=vmem, size = 0x9000, scoped, tag = 'internal scratch']
  #allocation2 [shape = 'f32[64,256]{1,0:T(8,128)}', space=vmem, size = 0x10000, scoped, tag = 'scratch operand']
  #allocation3 [shape = 'f32[64,64]{1,0:T(8,128)}', space=vmem, size = 0x8000, scoped, tag = 'scratch operand']
  %s0 = inlined_call_operand.vmem [shape: bf16[64,32], index: 0, kind: input, shape index: {}]
  %s1 = inlined_call_operand.vmem [shape: bf16[32,256], index: 1, kind: input, shape index: {}]
  %s2 = inlined_call_operand.hbm [shape: bf16[64,256], index: 2, kind: input, shape index: {}]
  %s3 = inlined_call_operand.vmem [shape: f32[1,256], index: 3, kind: input, shape index: {}]
  %s4 = inlined_call_operand.hbm [shape: bf16[64,128], index: 4, kind: input, shape index: {}]
  %s5 = inlined_call_operand.vmem [shape: f32[1,128], index: 5, kind: input, shape index: {}]
  %s6 = inlined_call_operand.hbm [shape: f32[64,128], index: 6, kind: output, shape index: {}]
  %s7 = sld [smem:[#allocation0]]
  $region42: #{tpu_custom_call.1} parent=0
    _
  %s9 = ssub.s32 1, %s7
  %s10 = scalar_select 0, %s9, %s7
  $region1: #{tpu_custom_call.1} parent=0
    #allocation4 [shape = 'u8[32768]{0}', space=vmem, size = 0x8000, scoped, tag = 'input window, operand 2, single buffered']
    #allocation5 [shape = 's32[1]{0}', space=sflag, size = 0x4, scoped, tag = 'scoped memory for tpu_custom_call.1']
    #allocation6 [shape = 's32[1]{0}', space=sflag, size = 0x4, scoped, tag = 'scoped memory for tpu_custom_call.1']
    #allocation7 [shape = 'u8[16384]{0}', space=vmem, size = 0x4000, scoped, tag = 'input window, operand 4, single buffered']
    #allocation8 [shape = 's32[1]{0}', space=sflag, size = 0x4, scoped, tag = 'scoped memory for tpu_custom_call.1']
    #allocation9 [shape = 'u8[32768]{0}', space=vmem, size = 0x8000, scoped, tag = 'output window, operand 0, single buffered']
    %11 = vsyncpa [#allocation5], 0
    %12 = vsyncpa [#allocation8], 0
    %13 = vsyncpa [#allocation6], 0
    // Predicated region
    $region2: #{tpu_custom_call.1} parent=1 // pred_check
      _
    $region3: #{tpu_custom_call.1} parent=1 // pred_check_branch
      %15 = sbr.rel (0) target = $region5
    $region4: #{tpu_custom_call.1} parent=1 // pred_region
      _
    $region5: #{tpu_custom_call.1} parent=1 // pred_fallthru
      _
    // Predicated region
    $region6: #{tpu_custom_call.1} parent=1 // pred_check
      _
    $region7: #{tpu_custom_call.1} parent=1 // pred_check_branch
      %17 = sbr.rel (0) target = $region9
    $region8: #{tpu_custom_call.1} parent=1 // pred_region
      _
    $region9: #{tpu_custom_call.1} parent=1 // pred_fallthru
      _
    // Predicated region
    $region10: #{tpu_custom_call.1} parent=1 // pred_check
      _
    $region11: #{tpu_custom_call.1} parent=1 // pred_check_branch
      %19 = sbr.rel (0) target = $region13
    $region12: #{tpu_custom_call.1} parent=1 // pred_region
      %21 = vsyncadd [#allocation5], 0
      %s22 = sshll.u32 %s2, 4
      %s23 = int_to_ptr.hbm [resolvable:$true] %s22
      %s24 = sshll.u32 [#allocation4], 4
      %s25 = int_to_ptr.vmem [resolvable:$true] %s24
      %30 = dma.hbm_to_vmem [thread:$0]  %s23, 1024, %s25, [#allocation5], 128, 128, 8
    $region13: #{tpu_custom_call.1} parent=1 // pred_fallthru
      _
    // Predicated region
    $region14: #{tpu_custom_call.1} parent=1 // pred_check
      _
    $region15: #{tpu_custom_call.1} parent=1 // pred_check_branch
      %32 = sbr.rel (0) target = $region17
    $region16: #{tpu_custom_call.1} parent=1 // pred_region
      _
    $region17: #{tpu_custom_call.1} parent=1 // pred_fallthru
      _
    // Predicated region
    $region18: #{tpu_custom_call.1} parent=1 // pred_check
      _
    $region19: #{tpu_custom_call.1} parent=1 // pred_check_branch
      %34 = sbr.rel (0) target = $region21
    $region20: #{tpu_custom_call.1} parent=1 // pred_region
      %36 = vsyncadd [#allocation8], 0
      %s37 = sshll.u32 %s4, 4
      %s38 = int_to_ptr.hbm [resolvable:$true] %s37
      %s39 = sshll.u32 [#allocation7], 4
      %s40 = int_to_ptr.vmem [resolvable:$true] %s39
      %45 = dma.hbm_to_vmem [thread:$0]  %s38, 512, %s40, [#allocation8], 64, 64, 4
    $region21: #{tpu_custom_call.1} parent=1 // pred_fallthru
      _
    // Predicated region
    $region22: #{tpu_custom_call.1} parent=1 // pred_check
      _
    $region23: #{tpu_custom_call.1} parent=1 // pred_check_branch
      %47 = sbr.rel (0) target = $region25
    $region24: #{tpu_custom_call.1} parent=1 // pred_region
      _
    $region25: #{tpu_custom_call.1} parent=1 // pred_fallthru
      _
    // Predicated region
    $region26: #{tpu_custom_call.1} parent=1 // pred_check
      _
    $region27: #{tpu_custom_call.1} parent=1 // pred_check_branch
      %49 = sbr.rel (0) target = $region29
    $region28: #{tpu_custom_call.1} parent=1 // pred_region
      %51 = dma.done [#allocation5], 1024
    $region29: #{tpu_custom_call.1} parent=1 // pred_fallthru
      _
    // Predicated region
    $region30: #{tpu_custom_call.1} parent=1 // pred_check
      _
    $region31: #{tpu_custom_call.1} parent=1 // pred_check_branch
      %53 = sbr.rel (0) target = $region33
    $region32: #{tpu_custom_call.1} parent=1 // pred_region
      %55 = dma.done [#allocation8], 512
    $region33: #{tpu_custom_call.1} parent=1 // pred_fallthru
      _
    %v57 = vld [vmem:[%s0] sm:$0xf]
    %v58 = vld [vmem:[%s0 + $0x4] sm:$0xf]
    %v59 = vld [vmem:[%s0 + $0x8] sm:$0xf]
    %v60 = vld [vmem:[%s0 + $0xc] sm:$0xf]
    %v61 = vld [vmem:[%s0 + $0x10] sm:$0xf]
    %v62 = vld [vmem:[%s0 + $0x14] sm:$0xf]
    %v63 = vld [vmem:[%s0 + $0x18] sm:$0xf]
    %v64 = vld [vmem:[%s0 + $0x1c] sm:$0xf]
    %v65 = vld [vmem:[%s1] sm:$0xff]
    %v66 = vld [vmem:[%s1 + $0x8] sm:$0xff]
    %v67 = vld [vmem:[%s1 + $0x10] sm:$0xff]
    %v68 = vld [vmem:[%s1 + $0x18] sm:$0xff]
    %v69 = vld [vmem:[%s3] sm:$0x3]
    %v71 = vperm.slane %v69, 0
    %v72 = vperm.slane %v69, 1
    %v83 = vunpack.c.l.b16 %v57
    %v84 = vunpack.c.l.b16 %v58
    %v85 = vunpack.c.l.b16 %v59
    %v86 = vunpack.c.l.b16 %v60
    %v87 = vunpack.c.l.b16 %v61
    %v88 = vunpack.c.l.b16 %v62
    %v89 = vunpack.c.l.b16 %v63
    %v90 = vunpack.c.l.b16 %v64
    %v91 = vpack.c.b16 %v84, %v83
    %v92 = vpack.c.b16 %v86, %v85
    %v93 = vpack.c.b16 %v88, %v87
    %v94 = vpack.c.b16 %v90, %v89
    %v99 = vunpack.c.l.b16 %v65
    %v100 = vunpack.c.h.b16 %v65
    %v101 = vunpack.c.l.b16 %v66
    %v102 = vunpack.c.h.b16 %v66
    %v103 = vunpack.c.l.b16 %v67
    %v104 = vunpack.c.h.b16 %v67
    %v105 = vunpack.c.l.b16 %v68
    %v106 = vunpack.c.h.b16 %v68
    %v107 = vpack.c.b16 %v101, %v99
    %v108 = vpack.c.b16 %v102, %v100
    %v109 = vpack.c.b16 %v105, %v103
    %v110 = vpack.c.b16 %v106, %v104
    %vm115 = vcmask 261120
    %v117 = vsel %vm115, %v91, 0
    %v120 = vsel %vm115, %v92, 0
    %v123 = vsel %vm115, %v93, 0
    %v126 = vsel %vm115, %v94, 0
    %128 = vmatpush.bf16.msra.mxu0 0
    %129 = vmatpush.bf16.msra.mxu0 0
    %130 = vmatpush.bf16.msra.mxu0 0
    %131 = vmatpush.bf16.msra.mxu0 0
    %132 = vmatpush.bf16.msra.mxu0 0
    %133 = vmatpush.bf16.msra.mxu0 0
    %134 = vmatpush.bf16.msra.mxu0 %v109
    %135 = vmatpush.bf16.msra.mxu0 %v107
    %136 = vmatmul.bf16.gmra.mxu0 %v117
    %v137 = vpop.f32.mrf.mxu0
    %v138 = vadd.f32 %v71, %v137
    %v139 = vpop.f32.mrf.mxu0
    %v140 = vadd.f32 %v71, %v139
    %141 = vmatmul.bf16.gmra.mxu0 %v120
    %v142 = vpop.f32.mrf.mxu0
    %v143 = vadd.f32 %v71, %v142
    %v144 = vpop.f32.mrf.mxu0
    %v145 = vadd.f32 %v71, %v144
    %146 = vmatmul.bf16.gmra.mxu0 %v123
    %v147 = vpop.f32.mrf.mxu0
    %v148 = vadd.f32 %v71, %v147
    %v149 = vpop.f32.mrf.mxu0
    %v150 = vadd.f32 %v71, %v149
    %151 = vmatmul.bf16.gmra.mxu0 %v126
    %v152 = vpop.f32.mrf.mxu0
    %v153 = vadd.f32 %v71, %v152
    %v154 = vpop.f32.mrf.mxu0
    %v155 = vadd.f32 %v71, %v154
    %156 = vdwg.mxu0
    %157 = vmatpush.bf16.msra.mxu0 0
    %158 = vmatpush.bf16.msra.mxu0 0
    %159 = vmatpush.bf16.msra.mxu0 0
    %160 = vmatpush.bf16.msra.mxu0 0
    %161 = vmatpush.bf16.msra.mxu0 0
    %162 = vmatpush.bf16.msra.mxu0 0
    %163 = vmatpush.bf16.msra.mxu0 %v110
    %164 = vmatpush.bf16.msra.mxu0 %v108
    %165 = vmatmul.bf16.gmra.mxu0 %v117
    %v166 = vpop.f32.mrf.mxu0
    %v167 = vadd.f32 %v72, %v166
    %v168 = vpop.f32.mrf.mxu0
    %v169 = vadd.f32 %v72, %v168
    %170 = vmatmul.bf16.gmra.mxu0 %v120
    %v171 = vpop.f32.mrf.mxu0
    %v172 = vadd.f32 %v72, %v171
    %v173 = vpop.f32.mrf.mxu0
    %v174 = vadd.f32 %v72, %v173
    %175 = vmatmul.bf16.gmra.mxu0 %v123
    %v176 = vpop.f32.mrf.mxu0
    %v177 = vadd.f32 %v72, %v176
    %v178 = vpop.f32.mrf.mxu0
    %v179 = vadd.f32 %v72, %v178
    %180 = vmatmul.bf16.gmra.mxu0 %v126
    %v181 = vpop.f32.mrf.mxu0
    %v182 = vadd.f32 %v72, %v181
    %v183 = vpop.f32.mrf.mxu0
    %v184 = vadd.f32 %v72, %v183
    %185 = vdwg.mxu0
    %186 = vst [vmem:[#allocation2] sm:$0xff] %v138
    %187 = vst [vmem:[#allocation2 + $0x8] sm:$0xff] %v167
    %188 = vst [vmem:[#allocation2 + $0x10] sm:$0xff] %v140
    %189 = vst [vmem:[#allocation2 + $0x18] sm:$0xff] %v169
    %190 = vst [vmem:[#allocation2 + $0x20] sm:$0xff] %v143
    %191 = vst [vmem:[#allocation2 + $0x28] sm:$0xff] %v172
    %192 = vst [vmem:[#allocation2 + $0x30] sm:$0xff] %v145
    %193 = vst [vmem:[#allocation2 + $0x38] sm:$0xff] %v174
    %194 = vst [vmem:[#allocation2 + $0x40] sm:$0xff] %v148
    %195 = vst [vmem:[#allocation2 + $0x48] sm:$0xff] %v177
    %196 = vst [vmem:[#allocation2 + $0x50] sm:$0xff] %v150
    %197 = vst [vmem:[#allocation2 + $0x58] sm:$0xff] %v179
    %198 = vst [vmem:[#allocation2 + $0x60] sm:$0xff] %v153
    %199 = vst [vmem:[#allocation2 + $0x68] sm:$0xff] %v182
    %200 = vst [vmem:[#allocation2 + $0x70] sm:$0xff] %v155
    %201 = vst [vmem:[#allocation2 + $0x78] sm:$0xff] %v184
    %v202 = vld [vmem:[#allocation4] sm:$0xff]
    %v203 = vld [vmem:[#allocation4 + $0x8] sm:$0xff]
    %v204 = vld [vmem:[#allocation4 + $0x10] sm:$0xff]
    %v205 = vld [vmem:[#allocation4 + $0x18] sm:$0xff]
    %v206 = vld [vmem:[#allocation4 + $0x20] sm:$0xff]
    %v207 = vld [vmem:[#allocation4 + $0x28] sm:$0xff]
    %v208 = vld [vmem:[#allocation4 + $0x30] sm:$0xff]
    %v209 = vld [vmem:[#allocation4 + $0x38] sm:$0xff]
    %v210 = vld [vmem:[#allocation2] sm:$0xff]
    %v211 = vld [vmem:[#allocation2 + $0x8] sm:$0xff]
    %v220 = vunpack.c.l.b16 %v202
    %v221 = vunpack.c.h.b16 %v202
    %v222 = vunpack.c.l.b16 %v203
    %v223 = vunpack.c.h.b16 %v203
    %v224 = vunpack.c.l.b16 %v204
    %v225 = vunpack.c.h.b16 %v204
    %v226 = vunpack.c.l.b16 %v205
    %v227 = vunpack.c.h.b16 %v205
    %v228 = vunpack.c.l.b16 %v206
    %v229 = vunpack.c.h.b16 %v206
    %v230 = vunpack.c.l.b16 %v207
    %v231 = vunpack.c.h.b16 %v207
    %v232 = vunpack.c.l.b16 %v208
    %v233 = vunpack.c.h.b16 %v208
    %v234 = vunpack.c.l.b16 %v209
    %v235 = vunpack.c.h.b16 %v209
    %v236 = vpack.c.b16 %v222, %v220
    %v237 = vpack.c.b16 %v223, %v221
    %v238 = vpack.c.b16 %v226, %v224
    %v239 = vpack.c.b16 %v227, %v225
    %v240 = vpack.c.b16 %v230, %v228
    %v241 = vpack.c.b16 %v231, %v229
    %v242 = vpack.c.b16 %v234, %v232
    %v243 = vpack.c.b16 %v235, %v233
    %vm252 = vcmask 523264
    %v254 = vsel %vm252, 0, 0
    %256 = vmatpush.bf16.msra.mxu0 0
    %257 = vmatpush.bf16.msra.mxu0 0
    %258 = vmatpush.bf16.msra.mxu0 0
    %259 = vmatpush.bf16.msra.mxu0 0
    %260 = vmatpush.bf16.msra.mxu0 %v242
    %261 = vmatpush.bf16.msra.mxu0 %v240
    %262 = vmatpush.bf16.msra.mxu0 %v238
    %263 = vmatpush.bf16.msra.mxu0 %v236
    %264 = vmatmul.bf16.gmra.mxu0 %v254
    %v265 = vpop.f32.mrf.mxu0
    %v266 = vadd.f32 0.0, %v265
    %v267 = vpop.f32.mrf.mxu0
    %268 = vdwg.mxu0
    %269 = vmatpush.bf16.msra.mxu0 0
    %270 = vmatpush.bf16.msra.mxu0 0
    %271 = vmatpush.bf16.msra.mxu0 0
    %272 = vmatpush.bf16.msra.mxu0 0
    %273 = vmatpush.bf16.msra.mxu0 %v243
    %274 = vmatpush.bf16.msra.mxu0 %v241
    %275 = vmatpush.bf16.msra.mxu0 %v239
    %276 = vmatpush.bf16.msra.mxu0 %v237
    %277 = vmatmul.bf16.gmra.mxu0 %v254
    %v278 = vpop.f32.mrf.mxu0
    %v279 = vadd.f32 0.0, %v278
    %v280 = vpop.f32.mrf.mxu0
    %281 = vdwg.mxu0
    %v282 = vadd.f32 %v210, %v266
    %v283 = vadd.f32 %v211, %v279
    %v284 = vmul.f32 %v282, 0.5
    %v285 = vtanh.pop %v284
    %v286 = vmul.f32 %v285, 0.5
    %v287 = vadd.f32 %v286, 0.5
    %v288 = vtanh.pop %v283
    %v289 = vmul.f32 %v283, 0.5
    %v290 = vtanh.pop %v289
    %v291 = vmul.f32 %v290, 0.5
    %v292 = vadd.f32 %v291, 0.5
    %v293 = vmul.f32 %v287, 0.0
    %v294 = vmul.f32 %v287, %v288
    %296 = vrot.lane.b32.xlu0 %v294, 64
    %v297 = vpop.permute.xlu0 %296
    %v299 = vadd.f32 %v293, %v297
    %v300 = vtanh.pop %v299
    %v301 = vmul.f32 %v292, %v300
    %303 = vrot.lane.b32.xlu0 %v301, 64
    %v304 = vpop.permute.xlu0 %303
    %306 = vst.msk [vmem:[#allocation3] sm:$0xff] %vm115, %v304
    %vm307 = vcmask 523520
    %308 = vst.msk [vmem:[#allocation3 + $0x38] sm:$0xff] %vm307, %v304
    %v309 = vld [vmem:[#allocation2 + $0x10] sm:$0xff]
    %v310 = vld [vmem:[#allocation2 + $0x18] sm:$0xff]
    %v311 = vpack.c.bf16 %v301, %v301
    %313 = vrot.lane.b32.xlu0 %v311, 64
    %v314 = vpop.permute.xlu0 %313
    %v316 = vsel %vm252, %v314, 0
    %318 = vmatpush.bf16.msra.mxu0 0
    %319 = vmatpush.bf16.msra.mxu0 0
    %320 = vmatpush.bf16.msra.mxu0 0
    %321 = vmatpush.bf16.msra.mxu0 0
    %322 = vmatpush.bf16.msra.mxu0 %v242
    %323 = vmatpush.bf16.msra.mxu0 %v240
    %324 = vmatpush.bf16.msra.mxu0 %v238
    %325 = vmatpush.bf16.msra.mxu0 %v236
    %326 = vmatmul.bf16.gmra.mxu0 %v316
    %v327 = vpop.f32.mrf.mxu0
    %v328 = vadd.f32 0.0, %v327
    %v329 = vpop.f32.mrf.mxu0
    %330 = vdwg.mxu0
    %331 = vmatpush.bf16.msra.mxu0 0
    %332 = vmatpush.bf16.msra.mxu0 0
    %333 = vmatpush.bf16.msra.mxu0 0
    %334 = vmatpush.bf16.msra.mxu0 0
    %335 = vmatpush.bf16.msra.mxu0 %v243
    %336 = vmatpush.bf16.msra.mxu0 %v241
    %337 = vmatpush.bf16.msra.mxu0 %v239
    %338 = vmatpush.bf16.msra.mxu0 %v237
    %339 = vmatmul.bf16.gmra.mxu0 %v316
    %v340 = vpop.f32.mrf.mxu0
    %v341 = vadd.f32 0.0, %v340
    %v342 = vpop.f32.mrf.mxu0
    %343 = vdwg.mxu0
    %v344 = vadd.f32 %v309, %v328
    %v345 = vadd.f32 %v310, %v341
    %v346 = vmul.f32 %v344, 0.5
    %v347 = vtanh.pop %v346
    %v348 = vmul.f32 %v347, 0.5
    %v349 = vadd.f32 %v348, 0.5
    %v350 = vtanh.pop %v345
    %v351 = vmul.f32 %v345, 0.5
    %v352 = vtanh.pop %v351
    %v353 = vmul.f32 %v352, 0.5
    %v354 = vadd.f32 %v353, 0.5
    %v355 = vmul.f32 %v349, %v299
    %v356 = vmul.f32 %v349, %v350
    %358 = vrot.lane.b32.xlu0 %v356, 64
    %v359 = vpop.permute.xlu0 %358
    %v361 = vadd.f32 %v355, %v359
    %v362 = vtanh.pop %v361
    %v363 = vmul.f32 %v354, %v362
    %365 = vrot.lane.b32.xlu0 %v363, 64
    %v366 = vpop.permute.xlu0 %365
    %368 = vst.msk [vmem:[#allocation3 + $0x8] sm:$0xff] %vm115, %v366
    %369 = vst.msk [vmem:[#allocation3 + $0x30] sm:$0xff] %vm307, %v366
    %v370 = vld [vmem:[#allocation2 + $0x20] sm:$0xff]
    %v371 = vld [vmem:[#allocation2 + $0x28] sm:$0xff]
    %v372 = vpack.c.bf16 %v363, %v363
    %374 = vrot.lane.b32.xlu0 %v372, 64
    %v375 = vpop.permute.xlu0 %374
    %v377 = vsel %vm252, %v375, 0
    %379 = vmatpush.bf16.msra.mxu0 0
    %380 = vmatpush.bf16.msra.mxu0 0
    %381 = vmatpush.bf16.msra.mxu0 0
    %382 = vmatpush.bf16.msra.mxu0 0
    %383 = vmatpush.bf16.msra.mxu0 %v242
    %384 = vmatpush.bf16.msra.mxu0 %v240
    %385 = vmatpush.bf16.msra.mxu0 %v238
    %386 = vmatpush.bf16.msra.mxu0 %v236
    %387 = vmatmul.bf16.gmra.mxu0 %v377
    %v388 = vpop.f32.mrf.mxu0
    %v389 = vadd.f32 0.0, %v388
    %v390 = vpop.f32.mrf.mxu0
    %391 = vdwg.mxu0
    %392 = vmatpush.bf16.msra.mxu0 0
    %393 = vmatpush.bf16.msra.mxu0 0
    %394 = vmatpush.bf16.msra.mxu0 0
    %395 = vmatpush.bf16.msra.mxu0 0
    %396 = vmatpush.bf16.msra.mxu0 %v243
    %397 = vmatpush.bf16.msra.mxu0 %v241
    %398 = vmatpush.bf16.msra.mxu0 %v239
    %399 = vmatpush.bf16.msra.mxu0 %v237
    %400 = vmatmul.bf16.gmra.mxu0 %v377
    %v401 = vpop.f32.mrf.mxu0
    %v402 = vadd.f32 0.0, %v401
    %v403 = vpop.f32.mrf.mxu0
    %404 = vdwg.mxu0
    %v405 = vadd.f32 %v370, %v389
    %v406 = vadd.f32 %v371, %v402
    %v407 = vmul.f32 %v405, 0.5
    %v408 = vtanh.pop %v407
    %v409 = vmul.f32 %v408, 0.5
    %v410 = vadd.f32 %v409, 0.5
    %v411 = vtanh.pop %v406
    %v412 = vmul.f32 %v406, 0.5
    %v413 = vtanh.pop %v412
    %v414 = vmul.f32 %v413, 0.5
    %v415 = vadd.f32 %v414, 0.5
    %v416 = vmul.f32 %v410, %v361
    %v417 = vmul.f32 %v410, %v411
    %419 = vrot.lane.b32.xlu0 %v417, 64
    %v420 = vpop.permute.xlu0 %419
    %v422 = vadd.f32 %v416, %v420
    %v423 = vtanh.pop %v422
    %v424 = vmul.f32 %v415, %v423
    %426 = vrot.lane.b32.xlu0 %v424, 64
    %v427 = vpop.permute.xlu0 %426
    %429 = vst.msk [vmem:[#allocation3 + $0x10] sm:$0xff] %vm115, %v427
    %430 = vst.msk [vmem:[#allocation3 + $0x28] sm:$0xff] %vm307, %v427
    %v431 = vld [vmem:[#allocation2 + $0x30] sm:$0xff]
    %v432 = vld [vmem:[#allocation2 + $0x38] sm:$0xff]
    %v433 = vpack.c.bf16 %v424, %v424
    %435 = vrot.lane.b32.xlu0 %v433, 64
    %v436 = vpop.permute.xlu0 %435
    %v438 = vsel %vm252, %v436, 0
    %440 = vmatpush.bf16.msra.mxu0 0
    %441 = vmatpush.bf16.msra.mxu0 0
    %442 = vmatpush.bf16.msra.mxu0 0
    %443 = vmatpush.bf16.msra.mxu0 0
    %444 = vmatpush.bf16.msra.mxu0 %v242
    %445 = vmatpush.bf16.msra.mxu0 %v240
    %446 = vmatpush.bf16.msra.mxu0 %v238
    %447 = vmatpush.bf16.msra.mxu0 %v236
    %448 = vmatmul.bf16.gmra.mxu0 %v438
    %v449 = vpop.f32.mrf.mxu0
    %v450 = vadd.f32 0.0, %v449
    %v451 = vpop.f32.mrf.mxu0
    %452 = vdwg.mxu0
    %453 = vmatpush.bf16.msra.mxu0 0
    %454 = vmatpush.bf16.msra.mxu0 0
    %455 = vmatpush.bf16.msra.mxu0 0
    %456 = vmatpush.bf16.msra.mxu0 0
    %457 = vmatpush.bf16.msra.mxu0 %v243
    %458 = vmatpush.bf16.msra.mxu0 %v241
    %459 = vmatpush.bf16.msra.mxu0 %v239
    %460 = vmatpush.bf16.msra.mxu0 %v237
    %461 = vmatmul.bf16.gmra.mxu0 %v438
    %v462 = vpop.f32.mrf.mxu0
    %v463 = vadd.f32 0.0, %v462
    %v464 = vpop.f32.mrf.mxu0
    %465 = vdwg.mxu0
    %v466 = vadd.f32 %v431, %v450
    %v467 = vadd.f32 %v432, %v463
    %v468 = vmul.f32 %v466, 0.5
    %v469 = vtanh.pop %v468
    %v470 = vmul.f32 %v469, 0.5
    %v471 = vadd.f32 %v470, 0.5
    %v472 = vtanh.pop %v467
    %v473 = vmul.f32 %v467, 0.5
    %v474 = vtanh.pop %v473
    %v475 = vmul.f32 %v474, 0.5
    %v476 = vadd.f32 %v475, 0.5
    %v477 = vmul.f32 %v471, %v422
    %v478 = vmul.f32 %v471, %v472
    %480 = vrot.lane.b32.xlu0 %v478, 64
    %v481 = vpop.permute.xlu0 %480
    %v483 = vadd.f32 %v477, %v481
    %v484 = vtanh.pop %v483
    %v485 = vmul.f32 %v476, %v484
    %487 = vrot.lane.b32.xlu0 %v485, 64
    %v488 = vpop.permute.xlu0 %487
    %490 = vst.msk [vmem:[#allocation3 + $0x18] sm:$0xff] %vm115, %v488
    %491 = vst.msk [vmem:[#allocation3 + $0x20] sm:$0xff] %vm307, %v488
    %v492 = vld [vmem:[#allocation2 + $0x40] sm:$0xff]
    %v493 = vld [vmem:[#allocation2 + $0x48] sm:$0xff]
    %v494 = vpack.c.bf16 %v485, %v485
    %496 = vrot.lane.b32.xlu0 %v494, 64
    %v497 = vpop.permute.xlu0 %496
    %v499 = vsel %vm252, %v497, 0
    %501 = vmatpush.bf16.msra.mxu0 0
    %502 = vmatpush.bf16.msra.mxu0 0
    %503 = vmatpush.bf16.msra.mxu0 0
    %504 = vmatpush.bf16.msra.mxu0 0
    %505 = vmatpush.bf16.msra.mxu0 %v242
    %506 = vmatpush.bf16.msra.mxu0 %v240
    %507 = vmatpush.bf16.msra.mxu0 %v238
    %508 = vmatpush.bf16.msra.mxu0 %v236
    %509 = vmatmul.bf16.gmra.mxu0 %v499
    %v510 = vpop.f32.mrf.mxu0
    %v511 = vadd.f32 0.0, %v510
    %v512 = vpop.f32.mrf.mxu0
    %513 = vdwg.mxu0
    %514 = vmatpush.bf16.msra.mxu0 0
    %515 = vmatpush.bf16.msra.mxu0 0
    %516 = vmatpush.bf16.msra.mxu0 0
    %517 = vmatpush.bf16.msra.mxu0 0
    %518 = vmatpush.bf16.msra.mxu0 %v243
    %519 = vmatpush.bf16.msra.mxu0 %v241
    %520 = vmatpush.bf16.msra.mxu0 %v239
    %521 = vmatpush.bf16.msra.mxu0 %v237
    %522 = vmatmul.bf16.gmra.mxu0 %v499
    %v523 = vpop.f32.mrf.mxu0
    %v524 = vadd.f32 0.0, %v523
    %v525 = vpop.f32.mrf.mxu0
    %526 = vdwg.mxu0
    %v527 = vadd.f32 %v492, %v511
    %v528 = vadd.f32 %v493, %v524
    %v529 = vmul.f32 %v527, 0.5
    %v530 = vtanh.pop %v529
    %v531 = vmul.f32 %v530, 0.5
    %v532 = vadd.f32 %v531, 0.5
    %v533 = vtanh.pop %v528
    %v534 = vmul.f32 %v528, 0.5
    %v535 = vtanh.pop %v534
    %v536 = vmul.f32 %v535, 0.5
    %v537 = vadd.f32 %v536, 0.5
    %v538 = vmul.f32 %v532, %v483
    %v539 = vmul.f32 %v532, %v533
    %541 = vrot.lane.b32.xlu0 %v539, 64
    %v542 = vpop.permute.xlu0 %541
    %v544 = vadd.f32 %v538, %v542
    %v545 = vtanh.pop %v544
    %v546 = vmul.f32 %v537, %v545
    %548 = vrot.lane.b32.xlu0 %v546, 64
    %v549 = vpop.permute.xlu0 %548
    %551 = vst.msk [vmem:[#allocation3 + $0x20] sm:$0xff] %vm115, %v549
    %552 = vst.msk [vmem:[#allocation3 + $0x18] sm:$0xff] %vm307, %v549
    %v553 = vld [vmem:[#allocation2 + $0x50] sm:$0xff]
    %v554 = vld [vmem:[#allocation2 + $0x58] sm:$0xff]
    %v555 = vpack.c.bf16 %v546, %v546
    %557 = vrot.lane.b32.xlu0 %v555, 64
    %v558 = vpop.permute.xlu0 %557
    %v560 = vsel %vm252, %v558, 0
    %562 = vmatpush.bf16.msra.mxu0 0
    %563 = vmatpush.bf16.msra.mxu0 0
    %564 = vmatpush.bf16.msra.mxu0 0
    %565 = vmatpush.bf16.msra.mxu0 0
    %566 = vmatpush.bf16.msra.mxu0 %v242
    %567 = vmatpush.bf16.msra.mxu0 %v240
    %568 = vmatpush.bf16.msra.mxu0 %v238
    %569 = vmatpush.bf16.msra.mxu0 %v236
    %570 = vmatmul.bf16.gmra.mxu0 %v560
    %v571 = vpop.f32.mrf.mxu0
    %v572 = vadd.f32 0.0, %v571
    %v573 = vpop.f32.mrf.mxu0
    %574 = vdwg.mxu0
    %575 = vmatpush.bf16.msra.mxu0 0
    %576 = vmatpush.bf16.msra.mxu0 0
    %577 = vmatpush.bf16.msra.mxu0 0
    %578 = vmatpush.bf16.msra.mxu0 0
    %579 = vmatpush.bf16.msra.mxu0 %v243
    %580 = vmatpush.bf16.msra.mxu0 %v241
    %581 = vmatpush.bf16.msra.mxu0 %v239
    %582 = vmatpush.bf16.msra.mxu0 %v237
    %583 = vmatmul.bf16.gmra.mxu0 %v560
    %v584 = vpop.f32.mrf.mxu0
    %v585 = vadd.f32 0.0, %v584
    %v586 = vpop.f32.mrf.mxu0
    %587 = vdwg.mxu0
    %v588 = vadd.f32 %v553, %v572
    %v589 = vadd.f32 %v554, %v585
    %v590 = vmul.f32 %v588, 0.5
    %v591 = vtanh.pop %v590
    %v592 = vmul.f32 %v591, 0.5
    %v593 = vadd.f32 %v592, 0.5
    %v594 = vtanh.pop %v589
    %v595 = vmul.f32 %v589, 0.5
    %v596 = vtanh.pop %v595
    %v597 = vmul.f32 %v596, 0.5
    %v598 = vadd.f32 %v597, 0.5
    %v599 = vmul.f32 %v593, %v544
    %v600 = vmul.f32 %v593, %v594
    %602 = vrot.lane.b32.xlu0 %v600, 64
    %v603 = vpop.permute.xlu0 %602
    %v605 = vadd.f32 %v599, %v603
    %v606 = vtanh.pop %v605
    %v607 = vmul.f32 %v598, %v606
    %609 = vrot.lane.b32.xlu0 %v607, 64
    %v610 = vpop.permute.xlu0 %609
    %612 = vst.msk [vmem:[#allocation3 + $0x28] sm:$0xff] %vm115, %v610
    %613 = vst.msk [vmem:[#allocation3 + $0x10] sm:$0xff] %vm307, %v610
    %v614 = vld [vmem:[#allocation2 + $0x60] sm:$0xff]
    %v615 = vld [vmem:[#allocation2 + $0x68] sm:$0xff]
    %v616 = vpack.c.bf16 %v607, %v607
    %618 = vrot.lane.b32.xlu0 %v616, 64
    %v619 = vpop.permute.xlu0 %618
    %v621 = vsel %vm252, %v619, 0
    %623 = vmatpush.bf16.msra.mxu0 0
    %624 = vmatpush.bf16.msra.mxu0 0
    %625 = vmatpush.bf16.msra.mxu0 0
    %626 = vmatpush.bf16.msra.mxu0 0
    %627 = vmatpush.bf16.msra.mxu0 %v242
    %628 = vmatpush.bf16.msra.mxu0 %v240
    %629 = vmatpush.bf16.msra.mxu0 %v238
    %630 = vmatpush.bf16.msra.mxu0 %v236
    %631 = vmatmul.bf16.gmra.mxu0 %v621
    %v632 = vpop.f32.mrf.mxu0
    %v633 = vadd.f32 0.0, %v632
    %v634 = vpop.f32.mrf.mxu0
    %635 = vdwg.mxu0
    %636 = vmatpush.bf16.msra.mxu0 0
    %637 = vmatpush.bf16.msra.mxu0 0
    %638 = vmatpush.bf16.msra.mxu0 0
    %639 = vmatpush.bf16.msra.mxu0 0
    %640 = vmatpush.bf16.msra.mxu0 %v243
    %641 = vmatpush.bf16.msra.mxu0 %v241
    %642 = vmatpush.bf16.msra.mxu0 %v239
    %643 = vmatpush.bf16.msra.mxu0 %v237
    %644 = vmatmul.bf16.gmra.mxu0 %v621
    %v645 = vpop.f32.mrf.mxu0
    %v646 = vadd.f32 0.0, %v645
    %v647 = vpop.f32.mrf.mxu0
    %648 = vdwg.mxu0
    %v649 = vadd.f32 %v614, %v633
    %v650 = vadd.f32 %v615, %v646
    %v651 = vmul.f32 %v649, 0.5
    %v652 = vtanh.pop %v651
    %v653 = vmul.f32 %v652, 0.5
    %v654 = vadd.f32 %v653, 0.5
    %v655 = vtanh.pop %v650
    %v656 = vmul.f32 %v650, 0.5
    %v657 = vtanh.pop %v656
    %v658 = vmul.f32 %v657, 0.5
    %v659 = vadd.f32 %v658, 0.5
    %v660 = vmul.f32 %v654, %v605
    %v661 = vmul.f32 %v654, %v655
    %663 = vrot.lane.b32.xlu0 %v661, 64
    %v664 = vpop.permute.xlu0 %663
    %v666 = vadd.f32 %v660, %v664
    %v667 = vtanh.pop %v666
    %v668 = vmul.f32 %v659, %v667
    %670 = vrot.lane.b32.xlu0 %v668, 64
    %v671 = vpop.permute.xlu0 %670
    %673 = vst.msk [vmem:[#allocation3 + $0x30] sm:$0xff] %vm115, %v671
    %674 = vst.msk [vmem:[#allocation3 + $0x8] sm:$0xff] %vm307, %v671
    %v675 = vld [vmem:[#allocation2 + $0x70] sm:$0xff]
    %v676 = vld [vmem:[#allocation2 + $0x78] sm:$0xff]
    %v677 = vpack.c.bf16 %v668, %v668
    %679 = vrot.lane.b32.xlu0 %v677, 64
    %v680 = vpop.permute.xlu0 %679
    %v682 = vsel %vm252, %v680, 0
    %684 = vmatpush.bf16.msra.mxu0 0
    %685 = vmatpush.bf16.msra.mxu0 0
    %686 = vmatpush.bf16.msra.mxu0 0
    %687 = vmatpush.bf16.msra.mxu0 0
    %688 = vmatpush.bf16.msra.mxu0 %v242
    %689 = vmatpush.bf16.msra.mxu0 %v240
    %690 = vmatpush.bf16.msra.mxu0 %v238
    %691 = vmatpush.bf16.msra.mxu0 %v236
    %692 = vmatmul.bf16.gmra.mxu0 %v682
    %v693 = vpop.f32.mrf.mxu0
    %v694 = vadd.f32 0.0, %v693
    %v695 = vpop.f32.mrf.mxu0
    %696 = vdwg.mxu0
    %697 = vmatpush.bf16.msra.mxu0 0
    %698 = vmatpush.bf16.msra.mxu0 0
    %699 = vmatpush.bf16.msra.mxu0 0
    %700 = vmatpush.bf16.msra.mxu0 0
    %701 = vmatpush.bf16.msra.mxu0 %v243
    %702 = vmatpush.bf16.msra.mxu0 %v241
    %703 = vmatpush.bf16.msra.mxu0 %v239
    %704 = vmatpush.bf16.msra.mxu0 %v237
    %705 = vmatmul.bf16.gmra.mxu0 %v682
    %v706 = vpop.f32.mrf.mxu0
    %v707 = vadd.f32 0.0, %v706
    %v708 = vpop.f32.mrf.mxu0
    %709 = vdwg.mxu0
    %v710 = vadd.f32 %v675, %v694
    %v711 = vadd.f32 %v676, %v707
    %v712 = vmul.f32 %v710, 0.5
    %v713 = vtanh.pop %v712
    %v714 = vmul.f32 %v713, 0.5
    %v715 = vadd.f32 %v714, 0.5
    %v716 = vtanh.pop %v711
    %v717 = vmul.f32 %v711, 0.5
    %v718 = vtanh.pop %v717
    %v719 = vmul.f32 %v718, 0.5
    %v720 = vadd.f32 %v719, 0.5
    %v721 = vmul.f32 %v715, %v666
    %v722 = vmul.f32 %v715, %v716
    %724 = vrot.lane.b32.xlu0 %v722, 64
    %v725 = vpop.permute.xlu0 %724
    %v727 = vadd.f32 %v721, %v725
    %v728 = vtanh.pop %v727
    %v729 = vmul.f32 %v720, %v728
    %731 = vrot.lane.b32.xlu0 %v729, 64
    %v732 = vpop.permute.xlu0 %731
    %734 = vst.msk [vmem:[#allocation3 + $0x38] sm:$0xff] %vm115, %v732
    %735 = vst.msk [vmem:[#allocation3] sm:$0xff] %vm307, %v732
    %v736 = vld [vmem:[#allocation3] sm:$0xff]
    %v737 = vld [vmem:[#allocation3 + $0x8] sm:$0xff]
    %v738 = vld [vmem:[#allocation3 + $0x10] sm:$0xff]
    %v739 = vld [vmem:[#allocation3 + $0x18] sm:$0xff]
    %v740 = vld [vmem:[#allocation3 + $0x20] sm:$0xff]
    %v741 = vld [vmem:[#allocation3 + $0x28] sm:$0xff]
    %v742 = vld [vmem:[#allocation3 + $0x30] sm:$0xff]
    %v743 = vld [vmem:[#allocation3 + $0x38] sm:$0xff]
    %v744 = vpack.c.bf16 %v737, %v736
    %v745 = vpack.c.bf16 %v739, %v738
    %v746 = vpack.c.bf16 %v741, %v740
    %v747 = vpack.c.bf16 %v743, %v742
    %v748 = vld [vmem:[#allocation7] sm:$0xf]
    %v749 = vld [vmem:[#allocation7 + $0x4] sm:$0xf]
    %v750 = vld [vmem:[#allocation7 + $0x8] sm:$0xf]
    %v751 = vld [vmem:[#allocation7 + $0xc] sm:$0xf]
    %v752 = vld [vmem:[#allocation7 + $0x10] sm:$0xf]
    %v753 = vld [vmem:[#allocation7 + $0x14] sm:$0xf]
    %v754 = vld [vmem:[#allocation7 + $0x18] sm:$0xf]
    %v755 = vld [vmem:[#allocation7 + $0x1c] sm:$0xf]
    %v756 = vld [vmem:[%s5] sm:$0x1]
    %v758 = vperm.slane %v756, 0
    %v768 = vunpack.c.l.b16 %v748
    %v769 = vunpack.c.l.b16 %v749
    %v770 = vunpack.c.l.b16 %v750
    %v771 = vunpack.c.l.b16 %v751
    %v772 = vunpack.c.l.b16 %v752
    %v773 = vunpack.c.l.b16 %v753
    %v774 = vunpack.c.l.b16 %v754
    %v775 = vunpack.c.l.b16 %v755
    %v776 = vpack.c.b16 %v769, %v768
    %v777 = vpack.c.b16 %v771, %v770
    %v778 = vpack.c.b16 %v773, %v772
    %v779 = vpack.c.b16 %v775, %v774
    %v785 = vsel %vm252, %v744, 0
    %v788 = vsel %vm252, %v745, 0
    %v791 = vsel %vm252, %v746, 0
    %v794 = vsel %vm252, %v747, 0
    %796 = vmatpush.bf16.msra.mxu0 0
    %797 = vmatpush.bf16.msra.mxu0 0
    %798 = vmatpush.bf16.msra.mxu0 0
    %799 = vmatpush.bf16.msra.mxu0 0
    %800 = vmatpush.bf16.msra.mxu0 %v779
    %801 = vmatpush.bf16.msra.mxu0 %v778
    %802 = vmatpush.bf16.msra.mxu0 %v777
    %803 = vmatpush.bf16.msra.mxu0 %v776
    %804 = vmatmul.bf16.gmra.mxu0 %v785
    %v805 = vpop.f32.mrf.mxu0
    %v806 = vadd.f32 %v758, %v805
    %v807 = vpop.f32.mrf.mxu0
    %v808 = vadd.f32 %v758, %v807
    %809 = vmatmul.bf16.gmra.mxu0 %v788
    %v810 = vpop.f32.mrf.mxu0
    %v811 = vadd.f32 %v758, %v810
    %v812 = vpop.f32.mrf.mxu0
    %v813 = vadd.f32 %v758, %v812
    %814 = vmatmul.bf16.gmra.mxu0 %v791
    %v815 = vpop.f32.mrf.mxu0
    %v816 = vadd.f32 %v758, %v815
    %v817 = vpop.f32.mrf.mxu0
    %v818 = vadd.f32 %v758, %v817
    %819 = vmatmul.bf16.gmra.mxu0 %v794
    %v820 = vpop.f32.mrf.mxu0
    %v821 = vadd.f32 %v758, %v820
    %v822 = vpop.f32.mrf.mxu0
    %v823 = vadd.f32 %v758, %v822
    %824 = vdwg.mxu0
    %825 = vmax.xlane.f32.xlu0 %v806
    %v826 = vpop.xlane.xlu0 %825
    %827 = vmax.xlane.f32.xlu0 %v808
    %v828 = vpop.xlane.xlu0 %827
    %829 = vmax.xlane.f32.xlu0 %v811
    %v830 = vpop.xlane.xlu0 %829
    %831 = vmax.xlane.f32.xlu0 %v813
    %v832 = vpop.xlane.xlu0 %831
    %833 = vmax.xlane.f32.xlu0 %v816
    %v834 = vpop.xlane.xlu0 %833
    %835 = vmax.xlane.f32.xlu0 %v818
    %v836 = vpop.xlane.xlu0 %835
    %837 = vmax.xlane.f32.xlu0 %v821
    %v838 = vpop.xlane.xlu0 %837
    %839 = vmax.xlane.f32.xlu0 %v823
    %v840 = vpop.xlane.xlu0 %839
    %v841 = vsub.f32 %v806, %v826
    %v842 = vsub.f32 %v808, %v828
    %v843 = vsub.f32 %v811, %v830
    %v844 = vsub.f32 %v813, %v832
    %v845 = vsub.f32 %v816, %v834
    %v846 = vsub.f32 %v818, %v836
    %v847 = vsub.f32 %v821, %v838
    %v848 = vsub.f32 %v823, %v840
    %v849 = vmul.f32 %v841, 1.442695
    %v850 = vpow.pop %v849
    %v851 = vmul.f32 %v842, 1.442695
    %v852 = vpow.pop %v851
    %v853 = vmul.f32 %v843, 1.442695
    %v854 = vpow.pop %v853
    %v855 = vmul.f32 %v844, 1.442695
    %v856 = vpow.pop %v855
    %v857 = vmul.f32 %v845, 1.442695
    %v858 = vpow.pop %v857
    %v859 = vmul.f32 %v846, 1.442695
    %v860 = vpow.pop %v859
    %v861 = vmul.f32 %v847, 1.442695
    %v862 = vpow.pop %v861
    %v863 = vmul.f32 %v848, 1.442695
    %v864 = vpow.pop %v863
    %865 = vadd.xlane.f32.xlu0 %v850
    %v866 = vpop.xlane.xlu0 %865
    %867 = vadd.xlane.f32.xlu0 %v852
    %v868 = vpop.xlane.xlu0 %867
    %869 = vadd.xlane.f32.xlu0 %v854
    %v870 = vpop.xlane.xlu0 %869
    %871 = vadd.xlane.f32.xlu0 %v856
    %v872 = vpop.xlane.xlu0 %871
    %873 = vadd.xlane.f32.xlu0 %v858
    %v874 = vpop.xlane.xlu0 %873
    %875 = vadd.xlane.f32.xlu0 %v860
    %v876 = vpop.xlane.xlu0 %875
    %877 = vadd.xlane.f32.xlu0 %v862
    %v878 = vpop.xlane.xlu0 %877
    %879 = vadd.xlane.f32.xlu0 %v864
    %v880 = vpop.xlane.xlu0 %879
    %v881 = vlog2.pop %v866
    %v882 = vmul.f32 %v881, 0.6931472
    %v883 = vlog2.pop %v868
    %v884 = vmul.f32 %v883, 0.6931472
    %v885 = vlog2.pop %v870
    %v886 = vmul.f32 %v885, 0.6931472
    %v887 = vlog2.pop %v872
    %v888 = vmul.f32 %v887, 0.6931472
    %v889 = vlog2.pop %v874
    %v890 = vmul.f32 %v889, 0.6931472
    %v891 = vlog2.pop %v876
    %v892 = vmul.f32 %v891, 0.6931472
    %v893 = vlog2.pop %v878
    %v894 = vmul.f32 %v893, 0.6931472
    %v895 = vlog2.pop %v880
    %v896 = vmul.f32 %v895, 0.6931472
    %v897 = vsub.f32 %v841, %v882
    %v898 = vsub.f32 %v842, %v884
    %v899 = vsub.f32 %v843, %v886
    %v900 = vsub.f32 %v844, %v888
    %v901 = vsub.f32 %v845, %v890
    %v902 = vsub.f32 %v846, %v892
    %v903 = vsub.f32 %v847, %v894
    %v904 = vsub.f32 %v848, %v896
    %905 = vst [vmem:[#allocation9] sm:$0xff] %v897
    %906 = vst [vmem:[#allocation9 + $0x8] sm:$0xff] %v898
    %907 = vst [vmem:[#allocation9 + $0x10] sm:$0xff] %v899
    %908 = vst [vmem:[#allocation9 + $0x18] sm:$0xff] %v900
    %909 = vst [vmem:[#allocation9 + $0x20] sm:$0xff] %v901
    %910 = vst [vmem:[#allocation9 + $0x28] sm:$0xff] %v902
    %911 = vst [vmem:[#allocation9 + $0x30] sm:$0xff] %v903
    %912 = vst [vmem:[#allocation9 + $0x38] sm:$0xff] %v904
    // Predicated region
    $region34: #{tpu_custom_call.1} parent=1 // pred_check
      _
    $region35: #{tpu_custom_call.1} parent=1 // pred_check_branch
      %914 = sbr.rel (0) target = $region37
    $region36: #{tpu_custom_call.1} parent=1 // pred_region
      %916 = vsyncadd [#allocation6], 0
      %s917 = sshll.u32 [#allocation9], 4
      %s918 = int_to_ptr.vmem [resolvable:$true] %s917
      %s919 = sshll.u32 %s6, 4
      %s920 = int_to_ptr.hbm [resolvable:$true] %s919
      %925 = dma.vmem_to_hbm [thread:$0]  %s918, 1024, %s920, [#allocation6], 128, 128, 8
    $region37: #{tpu_custom_call.1} parent=1 // pred_fallthru
      _
    // Predicated region
    $region38: #{tpu_custom_call.1} parent=1 // pred_check
      _
    $region39: #{tpu_custom_call.1} parent=1 // pred_check_branch
      %927 = sbr.rel (0) target = $region41
    $region40: #{tpu_custom_call.1} parent=1 // pred_region
      %929 = dma.done [#allocation6], 1024
    $region41: #{tpu_custom_call.1} parent=1 // pred_fallthru
      _
    %930 = vsyncpa [#allocation5], 1
    %931 = vsyncpa [#allocation8], 1
    %932 = vsyncpa [#allocation6], 1

</llo_original>
